<compile_context>
chip_gen: v7x
topology: tpu7x:2x2x1
jax: 0.10.0
libtpu: 0.0.40
codegen_flags: <defaults>
</compile_context>

<pallas_src>
import functools

import jax
import jax.numpy as jnp
from jax import lax
from jax.experimental import pallas as pl
from jax.experimental.pallas import tpu as pltpu

NEG_SLOPE = 0.01  # torch.nn.LeakyReLU default


def _leaky_relu(v):
    return jnp.where(v >= 0, v, NEG_SLOPE * v)


def _fixup_block_kernel(H, scal_ref, x_ref, w1_ref, w2_ref, o_ref):
    """One grid step = B_TILE batch images stacked as a (B_TILE*H, W*C) slab.

    scal_ref : SMEM (5,) f32            [bias1a, bias1b, bias2a, scale, bias2b]
    x_ref    : VMEM (B_TILE*H, W*C)     input slab (B_TILE images)
    w1_ref   : VMEM (3*W*C, W*C) bf16   conv1 band weights, dy taps stacked on K
    w2_ref   : VMEM (3*W*C, W*C) bf16   conv2 band weights
    o_ref    : VMEM (B_TILE*H, W*C)     output slab
    """
    M = x_ref.shape[0]                       # B_TILE * H rows

    b1a = scal_ref[0]
    b1b = scal_ref[1]
    b2a = scal_ref[2]
    scale = scal_ref[3]
    b2b = scal_ref[4]

    # Per-image row-validity masks for the dy = -1 / +1 taps (zero padding
    # along H).  Modular in H so rolls that wrap across image boundaries
    # inside the stacked slab get zeroed correctly.
    row = lax.broadcasted_iota(jnp.int32, x_ref.shape, 0)
    top_ok = (row % H) != 0          # reading row h-1 is in-bounds
    bot_ok = (row % H) != H - 1      # reading row h+1 is in-bounds

    def conv3x3(v, w_ref):
        # dy taps via sublane rolls (XLU) + masks, lane-concat into a single
        # (M, 3*W*C) bf16 operand, ONE MXU matmul (f32 accumulation), result
        # accumulated in vregs (no VMEM scratch).
        up = jnp.where(top_ok, pltpu.roll(v, shift=1, axis=0), 0.0)      # row h-1
        dn = jnp.where(bot_ok, pltpu.roll(v, shift=M - 1, axis=0), 0.0)  # row h+1
        lhs = jnp.concatenate([up, v, dn], axis=-1).astype(jnp.bfloat16)
        return jnp.dot(lhs, w_ref[...], preferred_element_type=jnp.float32)

    x = x_ref[...].astype(jnp.float32)       # kept live for the residual add

    out = conv3x3(x + b1a, w1_ref)           # conv1(x + bias1a)
    out = _leaky_relu(out + b1b)             # relu(out + bias1b)
    out = conv3x3(out + b2a, w2_ref)         # conv2(out + bias2a)
    out = out * scale + b2b                  # scale / bias
    out = _leaky_relu(out + x)               # residual (downsample is None)
    o_ref[...] = out.astype(o_ref.dtype)


def pack_conv_weight(w_hwio, W, C):
    """Pack a (3, 3, C, C) HWIO 3x3 weight into a (3*W*C, W*C) band matrix.

    out[dy*W*C + w_in*C + c_in, w_out*C + c_out] = w_hwio[dy, dx, c_in, c_out]
    with dx = w_in - w_out + 1, and zero where |w_in - w_out| > 1.  The zero
    off-band blocks implement the conv's zero padding along W; the dy taps are
    stacked along K so the kernel does a single matmul per conv (K = 3*W*C).
    """
    w_in = jnp.arange(W)[:, None]
    w_out = jnp.arange(W)[None, :]
    dx = w_in - w_out + 1                                      # (W, W)
    valid = (dx >= 0) & (dx <= 2)
    blocks = w_hwio[:, jnp.clip(dx, 0, 2)]                     # (3, W, W, C, C)
    blocks = jnp.where(valid[None, :, :, None, None], blocks, 0.0)
    # (dy, w_in, c_in, w_out, c_out) -> (3*W*C, W*C)
    return jnp.transpose(blocks, (0, 1, 3, 2, 4)).reshape(3 * W * C, W * C)


def _pick_b_tile(N, H):
    """Largest divisor of N that keeps >=2 grid steps (v7x: 2 TCs) and caps
    the matmul M dimension at 256 rows (fills v6e/v7x MXU, 2x v5e's)."""
    best = 1
    for d in range(1, N + 1):
        if N % d == 0 and (N // d >= 2 or N == 1) and d * H <= 256:
            best = d
    return best


@jax.jit
def fixup_basic_block(x_nhwc, w1_hwio, w2_hwio, scalars):
    """x_nhwc: (N,H,W,C) f32; w*: (3,3,C,C) HWIO; scalars: (5,) f32."""
    N, H, W, C = x_nhwc.shape
    WC = W * C
    B_TILE = _pick_b_tile(N, H)
    M = B_TILE * H

    # Lane-dense, contiguous (N*H, W*C) view; each grid step sees B_TILE*H rows.
    x2d = x_nhwc.reshape(N * H, WC)
    # Pack band weights once; bf16 for the MXU (f32 accumulation in-kernel).
    w1p = pack_conv_weight(w1_hwio.astype(jnp.float32), W, C).astype(jnp.bfloat16)
    w2p = pack_conv_weight(w2_hwio.astype(jnp.float32), W, C).astype(jnp.bfloat16)

    kernel = functools.partial(_fixup_block_kernel, H)
    out = pl.pallas_call(
        kernel,
        out_shape=jax.ShapeDtypeStruct((N * H, WC), jnp.float32),
        grid_spec=pltpu.PrefetchScalarGridSpec(
            num_scalar_prefetch=1,
            grid=(N // B_TILE,),
            in_specs=[
                pl.BlockSpec((M, WC), lambda n, s: (n, 0)),          # x slab
                pl.BlockSpec((3 * WC, WC), lambda n, s: (0, 0)),     # w1 (DMA'd once)
                pl.BlockSpec((3 * WC, WC), lambda n, s: (0, 0)),     # w2 (DMA'd once)
            ],
            out_specs=pl.BlockSpec((M, WC), lambda n, s: (n, 0)),
        ),
        compiler_params=pltpu.CompilerParams(
            dimension_semantics=("parallel",),   # lets v7x split batch over 2 TCs
        ),
    )(scalars, x2d, w1p, w2p)

    return out.reshape(N, H, W, C)


def _reference(x_nhwc, w1, w2, scalars):
    b1a, b1b, b2a, scale, b2b = (scalars[i] for i in range(5))
    dn = ('NHWC', 'HWIO', 'NHWC')
    out = lax.conv_general_dilated(x_nhwc + b1a, w1, (1, 1), 'SAME',
                                   dimension_numbers=dn)
    out = _leaky_relu(out + b1b)
    out = lax.conv_general_dilated(out + b2a, w2, (1, 1), 'SAME',
                                   dimension_numbers=dn)
    out = out * scale + b2b
    return _leaky_relu(out + x_nhwc)


if __name__ == "__main__":
    # Small but MXU-friendly shapes: 16 images, inplanes=planes=8, 16x16
    # spatial -> W*C = 128 lanes, B_TILE=8 -> 128 matmul rows, 2 grid steps.
    N, C, H, W = 16, 8, 16, 16
    key = jax.random.PRNGKey(0)
    kx, kw1, kw2 = jax.random.split(key, 3)

    # PyTorch convention input is NCHW; convert to NHWC (glue only).
    x_nchw = jax.random.normal(kx, (N, C, H, W), dtype=jnp.float32)
    x_nhwc = jnp.transpose(x_nchw, (0, 2, 3, 1))

    # Conv weights in HWIO layout.
    w1 = 0.1 * jax.random.normal(kw1, (3, 3, C, C), dtype=jnp.float32)
    w2 = 0.1 * jax.random.normal(kw2, (3, 3, C, C), dtype=jnp.float32)

    # Module-init scalars (biases = 0, scale = 1) and a non-trivial set that
    # exercises the scalar (bias/scale) path.
    scalars_init = jnp.array([0.0, 0.0, 0.0, 1.0, 0.0], dtype=jnp.float32)
    scalars_rand = jnp.array([0.3, -0.2, 0.1, 1.5, -0.4], dtype=jnp.float32)

    out_nhwc = None
    for scalars in (scalars_init, scalars_rand):
        out_nhwc = jax.block_until_ready(fixup_basic_block(x_nhwc, w1, w2, scalars))
        ref_nhwc = _reference(x_nhwc, w1, w2, scalars)
        # Matmul operands are bf16 (f32 accumulation), so the tolerance is
        # loosened vs the previous pure-f32 version.
        assert jnp.allclose(out_nhwc, ref_nhwc, atol=3e-2, rtol=3e-2), \
            "Pallas output does not match reference"

    # Back to PyTorch NCHW convention (glue only).
    out_nchw = jnp.transpose(out_nhwc, (0, 3, 1, 2))
    jax.block_until_ready(out_nchw)
    print("KERNEL_OK")
</pallas_src>

<mosaic_0001>
module attributes {stable_mosaic.version = 11 : i64} {
  func.func @_fixup_block_kernel(%arg0: i32, %arg1: memref<5xf32, #tpu.memory_space<smem>>, %arg2: memref<128x128xf32, #tpu.memory_space<vmem>>, %arg3: memref<384x128xbf16, #tpu.memory_space<vmem>>, %arg4: memref<384x128xbf16, #tpu.memory_space<vmem>>, %arg5: memref<128x128xf32, #tpu.memory_space<vmem>>) attributes {dimension_semantics = [#tpu.dimension_semantics<parallel>], iteration_bounds = array<i64: 2>, scalar_prefetch = 1 : i64, scratch_operands = 0 : i64, tpu.core_type = #tpu.core_type<tc>, window_params = [{transform_indices = @transform_0, window_bounds = array<i64: 128, 128>}, {pipeline_mode = #tpu.pipeline_mode<synchronous>, transform_indices = @transform_1, window_bounds = array<i64: 384, 128>}, {pipeline_mode = #tpu.pipeline_mode<synchronous>, transform_indices = @transform_2, window_bounds = array<i64: 384, 128>}, {transform_indices = @transform_3, window_bounds = array<i64: 128, 128>}]} {
    %c0 = arith.constant 0 : index
    %0 = memref.load %arg1[%c0] : memref<5xf32, #tpu.memory_space<smem>>
    %c1 = arith.constant 1 : index
    %1 = memref.load %arg1[%c1] : memref<5xf32, #tpu.memory_space<smem>>
    %c2 = arith.constant 2 : index
    %2 = memref.load %arg1[%c2] : memref<5xf32, #tpu.memory_space<smem>>
    %c3 = arith.constant 3 : index
    %3 = memref.load %arg1[%c3] : memref<5xf32, #tpu.memory_space<smem>>
    %c4 = arith.constant 4 : index
    %4 = memref.load %arg1[%c4] : memref<5xf32, #tpu.memory_space<smem>>
    %5 = tpu.iota {dimensions = array<i32: 0>} : vector<128x128xi32>
    %c16_i32 = arith.constant 16 : i32
    %c0_i32 = arith.constant 0 : i32
    %6 = arith.cmpi eq, %c16_i32, %c0_i32 : i32
    %c1_i32 = arith.constant 1 : i32
    %7 = arith.select %6, %c1_i32, %c16_i32 : i32
    %8 = vector.broadcast %7 : i32 to vector<128x128xi32>
    %9 = arith.remsi %5, %8 : vector<128x128xi32>
    %c0_i32_0 = arith.constant 0 : i32
    %10 = vector.broadcast %c0_i32_0 : i32 to vector<128x128xi32>
    %11 = arith.cmpi ne, %9, %10 : vector<128x128xi32>
    %c0_i32_1 = arith.constant 0 : i32
    %12 = vector.broadcast %c0_i32_1 : i32 to vector<128x128xi32>
    %13 = arith.cmpi slt, %9, %12 : vector<128x128xi32>
    %c0_i32_2 = arith.constant 0 : i32
    %14 = arith.cmpi slt, %7, %c0_i32_2 : i32
    %15 = vector.broadcast %14 : i1 to vector<128x128xi1>
    %16 = vector.broadcast %15 : vector<128x128xi1> to vector<128x128xi1>
    %17 = arith.xori %13, %16 : vector<128x128xi1>
    %18 = arith.andi %17, %11 : vector<128x128xi1>
    %19 = vector.broadcast %7 : i32 to vector<128x128xi32>
    %20 = arith.addi %9, %19 : vector<128x128xi32>
    %21 = arith.select %18, %20, %9 : vector<128x128xi1>, vector<128x128xi32>
    %c0_i32_3 = arith.constant 0 : i32
    %22 = vector.broadcast %c0_i32_3 : i32 to vector<128x128xi32>
    %23 = arith.cmpi ne, %21, %22 : vector<128x128xi32>
    %c16_i32_4 = arith.constant 16 : i32
    %c0_i32_5 = arith.constant 0 : i32
    %24 = arith.cmpi eq, %c16_i32_4, %c0_i32_5 : i32
    %c1_i32_6 = arith.constant 1 : i32
    %25 = arith.select %24, %c1_i32_6, %c16_i32_4 : i32
    %26 = vector.broadcast %25 : i32 to vector<128x128xi32>
    %27 = arith.remsi %5, %26 : vector<128x128xi32>
    %c0_i32_7 = arith.constant 0 : i32
    %28 = vector.broadcast %c0_i32_7 : i32 to vector<128x128xi32>
    %29 = arith.cmpi ne, %27, %28 : vector<128x128xi32>
    %c0_i32_8 = arith.constant 0 : i32
    %30 = vector.broadcast %c0_i32_8 : i32 to vector<128x128xi32>
    %31 = arith.cmpi slt, %27, %30 : vector<128x128xi32>
    %c0_i32_9 = arith.constant 0 : i32
    %32 = arith.cmpi slt, %25, %c0_i32_9 : i32
    %33 = vector.broadcast %32 : i1 to vector<128x128xi1>
    %34 = vector.broadcast %33 : vector<128x128xi1> to vector<128x128xi1>
    %35 = arith.xori %31, %34 : vector<128x128xi1>
    %36 = arith.andi %35, %29 : vector<128x128xi1>
    %37 = vector.broadcast %25 : i32 to vector<128x128xi32>
    %38 = arith.addi %27, %37 : vector<128x128xi32>
    %39 = arith.select %36, %38, %27 : vector<128x128xi1>, vector<128x128xi32>
    %c15_i32 = arith.constant 15 : i32
    %40 = vector.broadcast %c15_i32 : i32 to vector<128x128xi32>
    %41 = arith.cmpi ne, %39, %40 : vector<128x128xi32>
    %c0_10 = arith.constant 0 : index
    %c0_11 = arith.constant 0 : index
    %42 = vector.load %arg2[%c0_10, %c0_11] : memref<128x128xf32, #tpu.memory_space<vmem>>, vector<128x128xf32>
    %43 = vector.broadcast %0 : f32 to vector<128x128xf32>
    %44 = arith.addf %42, %43 : vector<128x128xf32>
    %c1_i32_12 = arith.constant 1 : i32
    %45 = tpu.dynamic_rotate %44 by %c1_i32_12 dim 0 : vector<128x128xf32>, i32 -> vector<128x128xf32>
    %cst = arith.constant 0.000000e+00 : f32
    %46 = vector.broadcast %cst : f32 to vector<128x128xf32>
    %47 = arith.select %23, %45, %46 : vector<128x128xi1>, vector<128x128xf32>
    %c127_i32 = arith.constant 127 : i32
    %48 = tpu.dynamic_rotate %44 by %c127_i32 dim 0 : vector<128x128xf32>, i32 -> vector<128x128xf32>
    %cst_13 = arith.constant 0.000000e+00 : f32
    %49 = vector.broadcast %cst_13 : f32 to vector<128x128xf32>
    %50 = arith.select %41, %48, %49 : vector<128x128xi1>, vector<128x128xf32>
    %51 = tpu.concatenate %47, %44, %50 in 1 : vector<128x128xf32>, vector<128x128xf32>, vector<128x128xf32> -> vector<128x384xf32>
    %52 = arith.truncf %51 : vector<128x384xf32> to vector<128x384xbf16>
    %c0_14 = arith.constant 0 : index
    %c0_15 = arith.constant 0 : index
    %53 = vector.load %arg3[%c0_14, %c0_15] : memref<384x128xbf16, #tpu.memory_space<vmem>>, vector<384x128xbf16>
    %cst_16 = arith.constant dense<0.000000e+00> : vector<128x128xf32>
    %54 = tpu.matmul %52, %53, %cst_16 {dimension_numbers = #tpu.dot_dimension_numbers<[1], [0], [0], [1], [0, 0, 1, 1], [], []>} : vector<128x384xbf16>, vector<384x128xbf16>, vector<128x128xf32> -> vector<128x128xf32>
    %55 = vector.broadcast %1 : f32 to vector<128x128xf32>
    %56 = arith.addf %54, %55 : vector<128x128xf32>
    %cst_17 = arith.constant 0.000000e+00 : f32
    %57 = vector.broadcast %cst_17 : f32 to vector<128x128xf32>
    %58 = arith.cmpf oge, %56, %57 : vector<128x128xf32>
    %cst_18 = arith.constant 0.00999999977 : f32
    %59 = vector.broadcast %cst_18 : f32 to vector<128x128xf32>
    %60 = arith.mulf %59, %56 : vector<128x128xf32>
    %61 = arith.select %58, %56, %60 : vector<128x128xi1>, vector<128x128xf32>
    %62 = vector.broadcast %2 : f32 to vector<128x128xf32>
    %63 = arith.addf %61, %62 : vector<128x128xf32>
    %c1_i32_19 = arith.constant 1 : i32
    %64 = tpu.dynamic_rotate %63 by %c1_i32_19 dim 0 : vector<128x128xf32>, i32 -> vector<128x128xf32>
    %cst_20 = arith.constant 0.000000e+00 : f32
    %65 = vector.broadcast %cst_20 : f32 to vector<128x128xf32>
    %66 = arith.select %23, %64, %65 : vector<128x128xi1>, vector<128x128xf32>
    %c127_i32_21 = arith.constant 127 : i32
    %67 = tpu.dynamic_rotate %63 by %c127_i32_21 dim 0 : vector<128x128xf32>, i32 -> vector<128x128xf32>
    %cst_22 = arith.constant 0.000000e+00 : f32
    %68 = vector.broadcast %cst_22 : f32 to vector<128x128xf32>
    %69 = arith.select %41, %67, %68 : vector<128x128xi1>, vector<128x128xf32>
    %70 = tpu.concatenate %66, %63, %69 in 1 : vector<128x128xf32>, vector<128x128xf32>, vector<128x128xf32> -> vector<128x384xf32>
    %71 = arith.truncf %70 : vector<128x384xf32> to vector<128x384xbf16>
    %c0_23 = arith.constant 0 : index
    %c0_24 = arith.constant 0 : index
    %72 = vector.load %arg4[%c0_23, %c0_24] : memref<384x128xbf16, #tpu.memory_space<vmem>>, vector<384x128xbf16>
    %cst_25 = arith.constant dense<0.000000e+00> : vector<128x128xf32>
    %73 = tpu.matmul %71, %72, %cst_25 {dimension_numbers = #tpu.dot_dimension_numbers<[1], [0], [0], [1], [0, 0, 1, 1], [], []>} : vector<128x384xbf16>, vector<384x128xbf16>, vector<128x128xf32> -> vector<128x128xf32>
    %74 = vector.broadcast %3 : f32 to vector<128x128xf32>
    %75 = arith.mulf %73, %74 : vector<128x128xf32>
    %76 = vector.broadcast %4 : f32 to vector<128x128xf32>
    %77 = arith.addf %75, %76 : vector<128x128xf32>
    %78 = arith.addf %77, %42 : vector<128x128xf32>
    %cst_26 = arith.constant 0.000000e+00 : f32
    %79 = vector.broadcast %cst_26 : f32 to vector<128x128xf32>
    %80 = arith.cmpf oge, %78, %79 : vector<128x128xf32>
    %cst_27 = arith.constant 0.00999999977 : f32
    %81 = vector.broadcast %cst_27 : f32 to vector<128x128xf32>
    %82 = arith.mulf %81, %78 : vector<128x128xf32>
    %83 = arith.select %80, %78, %82 : vector<128x128xi1>, vector<128x128xf32>
    %c0_28 = arith.constant 0 : index
    %c0_29 = arith.constant 0 : index
    %84 = vector.load %arg5[%c0_28, %c0_29] : memref<128x128xf32, #tpu.memory_space<vmem>>, vector<128x128xf32>
    tpu.vector_store %arg5[%c0_28, %c0_29], %83 {strides = array<i32>} : memref<128x128xf32, #tpu.memory_space<vmem>>, vector<128x128xf32>,
    return
  }
  func.func @transform_0(%arg0: i32, %arg1: memref<5xf32, #tpu.memory_space<smem>>) -> (i32, i32) {
    %c0_i32 = arith.constant 0 : i32
    %c0_i32_0 = arith.constant 0 : i32
    return %arg0, %c0_i32 : i32, i32
  }
  func.func @transform_1(%arg0: i32, %arg1: memref<5xf32, #tpu.memory_space<smem>>) -> (i32, i32) {
    %c0_i32 = arith.constant 0 : i32
    %c0_i32_0 = arith.constant 0 : i32
    %c0_i32_1 = arith.constant 0 : i32
    return %c0_i32, %c0_i32_0 : i32, i32
  }
  func.func @transform_2(%arg0: i32, %arg1: memref<5xf32, #tpu.memory_space<smem>>) -> (i32, i32) {
    %c0_i32 = arith.constant 0 : i32
    %c0_i32_0 = arith.constant 0 : i32
    %c0_i32_1 = arith.constant 0 : i32
    return %c0_i32, %c0_i32_0 : i32, i32
  }
  func.func @transform_3(%arg0: i32, %arg1: memref<5xf32, #tpu.memory_space<smem>>) -> (i32, i32) {
    %c0_i32 = arith.constant 0 : i32
    %c0_i32_0 = arith.constant 0 : i32
    return %arg0, %c0_i32 : i32, i32
  }
}

</mosaic_0001>

<llo_original>
// kernel: fixup_basic_block.1
$region0: #{fixup_basic_block.1}
  #allocation0 [shape = 'u32[]', space=smem, size = 0x4, offset = 0x4, fixed_abs, tag = 'smem constant byte address 0x4 - core index']
  #allocation1 [shape = 'u32[144,128]{1,0:T(1,128)}', space=vmem, size = 0x12000, scoped, tag = 'internal scratch']
  #allocation2 [shape = 's32[1]{0}', space=sflag, size = 0x4, scoped, tag = 'scoped memory for fixup_basic_block.1']
  #allocation3 [shape = 'u8[512]{0}', space=smem, size = 0x200, scoped, tag = 'prefetched SMEM operand 0']
  %s0 = inlined_call_operand.vmem [shape: f32[5], index: 0, kind: input, shape index: {}]
  %s1 = inlined_call_operand.vmem [shape: f32[256,128], index: 1, kind: input, shape index: {}]
  %s2 = inlined_call_operand.vmem [shape: bf16[384,128], index: 2, kind: input, shape index: {}]
  %s3 = inlined_call_operand.vmem [shape: bf16[384,128], index: 3, kind: input, shape index: {}]
  %s4 = inlined_call_operand.vmem [shape: f32[256,128], index: 4, kind: output, shape index: {}]
  %s5 = sld [smem:[#allocation0]]
  $region45: #{fixup_basic_block.1} parent=0
    _
  %s7 = ssub.s32 1, %s5
  %s8 = scalar_select 0, %s7, %s5
  %s9 = sshll.u32 %s0, 4
  %s10 = int_to_ptr.vmem [resolvable:$true] %s9
  %12 = dma.vmem_to_smem %s10, 16, [#allocation3], [#allocation2]
  %13 = dma.done [#allocation2], 16
  %14 = sfence
  loop: start=0, step=1, limit=4
  $region2: #{fixup_basic_block.1} parent=0 // loop_pre_header
    _
  $region3: #{fixup_basic_block.1} parent=0 // loop_header
    %s16 = sphi 0, %s20
    %p17 = scmp.ge.s32.totalorder %s16, 4
    %s26 = sphi 0, %s28
    %s29 = sphi 0, %s26
    %s30 = sphi 0, %s29
    %s46 = sphi 0, %s30
    %s50 = sphi 0, %s50
    %s52 = sphi 0, %s50
    %s53 = sphi 0, %s52
    %s67 = sphi 0, %s53
    %s71 = sphi 0, %s71
    %s73 = sphi 0, %s71
    %s74 = sphi 0, %s73
    %s88 = sphi 0, %s74
    %s94 = sphi 0, %s96
    %s97 = sphi 0, %s94
    %s98 = sphi 0, %s97
    %s114 = sphi 0, %s98
  $region4: #{fixup_basic_block.1} parent=0 // loop_header_branch
    %19 = sbr.rel (%p17) target = $region8
  $region5: #{fixup_basic_block.1} parent=0 // loop_body
    %s21 = ssub.s32 %s16, 1
    %s22 = ssub.s32 %s16, 2
    %s23 = sadd.s32 %s16, 1
    %s24 = ssub.s32 %s16, %s23
    %p25 = scmp.eq.s32.totalorder %s24, 0
    %s27 = sadd.s32 %s26, 1
    %s28 = scalar_select %p25, %s26, %s27
    %p31 = pneg %p25
    %p32 = scmp.eq.s32.totalorder %s16, 1
    %p33 = por %p31, %p32
    %p34 = scmp.ne.s32.totalorder %s26, %s29
    %p35 = scmp.eq.s32.totalorder %s16, 0
    %p36 = por %p34, %p35
    %p37 = scmp.ne.s32.totalorder %s26, %s29
    %p38 = scmp.eq.s32.totalorder %s21, 1
    %p39 = por %p37, %p38
    %p40 = scmp.ne.s32.totalorder %s29, %s30
    %p41 = scmp.eq.s32.totalorder %s21, 0
    %p42 = por %p40, %p41
    %p43 = scmp.ne.s32.totalorder %s29, %s30
    %p44 = scmp.eq.s32.totalorder %s22, 1
    %p45 = por %p43, %p44
    %p47 = scmp.ne.s32.totalorder %s30, %s46
    %p48 = scmp.eq.s32.totalorder %s22, 0
    %p49 = por %p47, %p48
    %s51 = sadd.s32 %s50, 1
    %p54 = scmp.eq.s32.totalorder %s16, 1
    %p55 = scmp.ne.s32.totalorder %s50, %s52
    %p56 = scmp.eq.s32.totalorder %s16, 0
    %p57 = por %p55, %p56
    %p58 = scmp.ne.s32.totalorder %s50, %s52
    %p59 = scmp.eq.s32.totalorder %s21, 1
    %p60 = por %p58, %p59
    %p61 = scmp.ne.s32.totalorder %s52, %s53
    %p62 = scmp.eq.s32.totalorder %s21, 0
    %p63 = por %p61, %p62
    %p64 = scmp.ne.s32.totalorder %s52, %s53
    %p65 = scmp.eq.s32.totalorder %s22, 1
    %p66 = por %p64, %p65
    %p68 = scmp.ne.s32.totalorder %s53, %s67
    %p69 = scmp.eq.s32.totalorder %s22, 0
    %p70 = por %p68, %p69
    %s72 = sadd.s32 %s71, 1
    %p75 = scmp.eq.s32.totalorder %s16, 1
    %p76 = scmp.ne.s32.totalorder %s71, %s73
    %p77 = scmp.eq.s32.totalorder %s16, 0
    %p78 = por %p76, %p77
    %p79 = scmp.ne.s32.totalorder %s71, %s73
    %p80 = scmp.eq.s32.totalorder %s21, 1
    %p81 = por %p79, %p80
    %p82 = scmp.ne.s32.totalorder %s73, %s74
    %p83 = scmp.eq.s32.totalorder %s21, 0
    %p84 = por %p82, %p83
    %p85 = scmp.ne.s32.totalorder %s73, %s74
    %p86 = scmp.eq.s32.totalorder %s22, 1
    %p87 = por %p85, %p86
    %p89 = scmp.ne.s32.totalorder %s74, %s88
    %p90 = scmp.eq.s32.totalorder %s22, 0
    %p91 = por %p89, %p90
    %s92 = ssub.s32 %s16, %s23
    %p93 = scmp.eq.s32.totalorder %s92, 0
    %s95 = sadd.s32 %s94, 1
    %s96 = scalar_select %p93, %s94, %s95
    %p99 = pneg %p93
    %p100 = scmp.eq.s32.totalorder %s16, 1
    %p101 = por %p99, %p100
    %p102 = scmp.ne.s32.totalorder %s94, %s97
    %p103 = scmp.eq.s32.totalorder %s16, 0
    %p104 = por %p102, %p103
    %p105 = scmp.ne.s32.totalorder %s94, %s97
    %p106 = scmp.eq.s32.totalorder %s21, 1
    %p107 = por %p105, %p106
    %p108 = scmp.ne.s32.totalorder %s97, %s98
    %p109 = scmp.eq.s32.totalorder %s21, 0
    %p110 = por %p108, %p109
    %p111 = scmp.ne.s32.totalorder %s97, %s98
    %p112 = scmp.eq.s32.totalorder %s22, 1
    %p113 = por %p111, %p112
    %p115 = scmp.ne.s32.totalorder %s98, %s114
    %p116 = scmp.eq.s32.totalorder %s22, 0
    %p117 = por %p115, %p116
    %p118 = scmp.le.s32.totalorder 1, %s16
    %p119 = scmp.lt.s32.totalorder %s16, 3
    %p120 = pnand %p118, %p119
    %p121 = pneg %p120
    // Predicated region
    $region9: #{fixup_basic_block.1} parent=5 // pred_check
      _
    $region10: #{fixup_basic_block.1} parent=5 // pred_check_branch
      %123 = sbr.rel (%p120) target = $region12
    $region11: #{fixup_basic_block.1} parent=5 // pred_region
      %s124 = ssub.s32 %s16, 1
      // Predicated region
      $region13: #{fixup_basic_block.1} parent=11 // pred_check
        %p125 = pneg %p63
      $region14: #{fixup_basic_block.1} parent=11 // pred_check_branch
        %127 = sbr.rel (%p125) target = $region16
      $region15: #{fixup_basic_block.1} parent=11 // pred_region
        _
      $region16: #{fixup_basic_block.1} parent=11 // pred_fallthru
        _
      // Predicated region
      $region17: #{fixup_basic_block.1} parent=11 // pred_check
        %p128 = pneg %p84
      $region18: #{fixup_basic_block.1} parent=11 // pred_check_branch
        %130 = sbr.rel (%p128) target = $region20
      $region19: #{fixup_basic_block.1} parent=11 // pred_region
        _
      $region20: #{fixup_basic_block.1} parent=11 // pred_fallthru
        _
    $region12: #{fixup_basic_block.1} parent=5 // pred_fallthru
      _
    %p131 = scmp.lt.s32.totalorder %s16, 2
    // Predicated region
    $region21: #{fixup_basic_block.1} parent=5 // pred_check
      %p132 = pneg %p131
    $region22: #{fixup_basic_block.1} parent=5 // pred_check_branch
      %134 = sbr.rel (%p132) target = $region24
    $region23: #{fixup_basic_block.1} parent=5 // pred_region
      // Predicated region
      $region25: #{fixup_basic_block.1} parent=23 // pred_check
        %p135 = pneg %p36
      $region26: #{fixup_basic_block.1} parent=23 // pred_check_branch
        %137 = sbr.rel (%p135) target = $region28
      $region27: #{fixup_basic_block.1} parent=23 // pred_region
        %s138 = smul.u32 16, %s16
        %p139 = scmp.lt.s32.totalorder %s138, 31
        %s140 = scalar_select %p139, %s138, 31
        %s141 = smul.addr %s140, 8
        %s142 = scalar_lea.vmem %s1, %s141
        %s143 = smul.u32 16, %s16
      $region28: #{fixup_basic_block.1} parent=23 // pred_fallthru
        _
    $region24: #{fixup_basic_block.1} parent=5 // pred_fallthru
      _
    %p144 = scmp.le.s32.totalorder 1, %s16
    %p145 = scmp.lt.s32.totalorder %s16, 3
    %p146 = pnand %p144, %p145
    %p147 = pneg %p146
    // Predicated region
    $region29: #{fixup_basic_block.1} parent=5 // pred_check
      _
    $region30: #{fixup_basic_block.1} parent=5 // pred_check_branch
      %149 = sbr.rel (%p146) target = $region32
    $region31: #{fixup_basic_block.1} parent=5 // pred_region
      %s150 = ssub.s32 %s16, 1
      %s151 = smul.u32 16, %s21
      %p152 = scmp.lt.s32.totalorder %s151, 31
      %s153 = scalar_select %p152, %s151, 31
      %s154 = smul.addr %s153, 8
      %s155 = scalar_lea.vmem %s1, %s154
      %p156 = pneg %p42
      %p157 = pneg %p39
      %p158 = pneg %p63
      %p159 = pneg %p60
      %p160 = pneg %p84
      %p161 = pneg %p81
      %p162 = pneg %p110
      %p163 = pneg %p107
      %s164 = smul.u32 16, %s21
      %p165 = scmp.lt.s32.totalorder %s164, 31
      %s166 = scalar_select %p165, %s164, 31
      %s167 = smul.addr %s166, 8
      %s168 = scalar_lea.vmem %s4, %s167
      %s169 = smul.u32 16, %s21
      %p170 = scmp.lt.s32.totalorder %s169, 31
      %s171 = scalar_select %p170, %s169, 31
      %s172 = smul.addr %s171, 8
      %s173 = scalar_lea.vmem %s1, %s172
      %s174 = smul.u32 16, %s21
      %s175 = smul.u32 16, %s21
      %p176 = scmp.lt.s32.totalorder %s175, 31
      %s177 = scalar_select %p176, %s175, 31
      %s178 = smul.addr %s177, 8
      %s179 = scalar_lea.vmem %s4, %s178
      %s180 = smul.u32 16, %s21
      %s182 = sld [smem:[#allocation3]]
      %s183 = sld [smem:[#allocation3 + $0x1]]
      %s184 = sld [smem:[#allocation3 + $0x2]]
      %s185 = sld [smem:[#allocation3 + $0x3]]
      %s186 = sld [smem:[#allocation3 + $0x4]]
      %v187 = vlaneseq
      %v188 = vshrl.u32 %v187, 7
      %v189 = vadd.s32 %v188, 8
      %v190 = vadd.s32 %v188, 16
      %v191 = vadd.s32 %v188, 24
      %v192 = vadd.s32 %v188, 32
      %v193 = vadd.s32 %v188, 40
      %v194 = vadd.s32 %v188, 48
      %v195 = vadd.s32 %v188, 56
      %v196 = vadd.s32 %v188, 64
      %v197 = vadd.s32 %v188, 72
      %v198 = vadd.s32 %v188, 80
      %v199 = vadd.s32 %v188, 88
      %v200 = vadd.s32 %v188, 96
      %v201 = vadd.s32 %v188, 104
      %v202 = vadd.s32 %v188, 112
      %v203 = vadd.s32 %v188, 120
      %vm204 = vcmp.lt.s32.totalorder %v188, 0
      %v205 = vsub.s32 0, %v188
      %v206 = vsel %vm204, %v205, %v188
      %v207 = vshrl.u32 %v206, 4
      %v208 = vand.u32 %v206, 15
      %v209 = vsub.s32 0, %v208
      %v210 = vsel %vm204, %v209, %v208
      %vm211 = vcmp.lt.s32.totalorder %v189, 0
      %v212 = vsub.s32 0, %v189
      %v213 = vsel %vm211, %v212, %v189
      %v214 = vshrl.u32 %v213, 4
      %v215 = vand.u32 %v213, 15
      %v216 = vsub.s32 0, %v215
      %v217 = vsel %vm211, %v216, %v215
      %vm218 = vcmp.lt.s32.totalorder %v190, 0
      %v219 = vsub.s32 0, %v190
      %v220 = vsel %vm218, %v219, %v190
      %v221 = vshrl.u32 %v220, 4
      %v222 = vand.u32 %v220, 15
      %v223 = vsub.s32 0, %v222
      %v224 = vsel %vm218, %v223, %v222
      %vm225 = vcmp.lt.s32.totalorder %v191, 0
      %v226 = vsub.s32 0, %v191
      %v227 = vsel %vm225, %v226, %v191
      %v228 = vshrl.u32 %v227, 4
      %v229 = vand.u32 %v227, 15
      %v230 = vsub.s32 0, %v229
      %v231 = vsel %vm225, %v230, %v229
      %vm232 = vcmp.lt.s32.totalorder %v192, 0
      %v233 = vsub.s32 0, %v192
      %v234 = vsel %vm232, %v233, %v192
      %v235 = vshrl.u32 %v234, 4
      %v236 = vand.u32 %v234, 15
      %v237 = vsub.s32 0, %v236
      %v238 = vsel %vm232, %v237, %v236
      %vm239 = vcmp.lt.s32.totalorder %v193, 0
      %v240 = vsub.s32 0, %v193
      %v241 = vsel %vm239, %v240, %v193
      %v242 = vshrl.u32 %v241, 4
      %v243 = vand.u32 %v241, 15
      %v244 = vsub.s32 0, %v243
      %v245 = vsel %vm239, %v244, %v243
      %vm246 = vcmp.lt.s32.totalorder %v194, 0
      %v247 = vsub.s32 0, %v194
      %v248 = vsel %vm246, %v247, %v194
      %v249 = vshrl.u32 %v248, 4
      %v250 = vand.u32 %v248, 15
      %v251 = vsub.s32 0, %v250
      %v252 = vsel %vm246, %v251, %v250
      %vm253 = vcmp.lt.s32.totalorder %v195, 0
      %v254 = vsub.s32 0, %v195
      %v255 = vsel %vm253, %v254, %v195
      %v256 = vshrl.u32 %v255, 4
      %v257 = vand.u32 %v255, 15
      %v258 = vsub.s32 0, %v257
      %v259 = vsel %vm253, %v258, %v257
      %vm260 = vcmp.lt.s32.totalorder %v196, 0
      %v261 = vsub.s32 0, %v196
      %v262 = vsel %vm260, %v261, %v196
      %v263 = vshrl.u32 %v262, 4
      %v264 = vand.u32 %v262, 15
      %v265 = vsub.s32 0, %v264
      %v266 = vsel %vm260, %v265, %v264
      %vm267 = vcmp.lt.s32.totalorder %v197, 0
      %v268 = vsub.s32 0, %v197
      %v269 = vsel %vm267, %v268, %v197
      %v270 = vshrl.u32 %v269, 4
      %v271 = vand.u32 %v269, 15
      %v272 = vsub.s32 0, %v271
      %v273 = vsel %vm267, %v272, %v271
      %vm274 = vcmp.lt.s32.totalorder %v198, 0
      %v275 = vsub.s32 0, %v198
      %v276 = vsel %vm274, %v275, %v198
      %v277 = vshrl.u32 %v276, 4
      %v278 = vand.u32 %v276, 15
      %v279 = vsub.s32 0, %v278
      %v280 = vsel %vm274, %v279, %v278
      %vm281 = vcmp.lt.s32.totalorder %v199, 0
      %v282 = vsub.s32 0, %v199
      %v283 = vsel %vm281, %v282, %v199
      %v284 = vshrl.u32 %v283, 4
      %v285 = vand.u32 %v283, 15
      %v286 = vsub.s32 0, %v285
      %v287 = vsel %vm281, %v286, %v285
      %vm288 = vcmp.lt.s32.totalorder %v200, 0
      %v289 = vsub.s32 0, %v200
      %v290 = vsel %vm288, %v289, %v200
      %v291 = vshrl.u32 %v290, 4
      %v292 = vand.u32 %v290, 15
      %v293 = vsub.s32 0, %v292
      %v294 = vsel %vm288, %v293, %v292
      %vm295 = vcmp.lt.s32.totalorder %v201, 0
      %v296 = vsub.s32 0, %v201
      %v297 = vsel %vm295, %v296, %v201
      %v298 = vshrl.u32 %v297, 4
      %v299 = vand.u32 %v297, 15
      %v300 = vsub.s32 0, %v299
      %v301 = vsel %vm295, %v300, %v299
      %vm302 = vcmp.lt.s32.totalorder %v202, 0
      %v303 = vsub.s32 0, %v202
      %v304 = vsel %vm302, %v303, %v202
      %v305 = vshrl.u32 %v304, 4
      %v306 = vand.u32 %v304, 15
      %v307 = vsub.s32 0, %v306
      %v308 = vsel %vm302, %v307, %v306
      %vm309 = vcmp.lt.s32.totalorder %v203, 0
      %v310 = vsub.s32 0, %v203
      %v311 = vsel %vm309, %v310, %v203
      %v312 = vshrl.u32 %v311, 4
      %v313 = vand.u32 %v311, 15
      %v314 = vsub.s32 0, %v313
      %v315 = vsel %vm309, %v314, %v313
      %vm316 = vcmp.ne.s32.totalorder %v210, 0
      %vm317 = vcmp.ne.s32.totalorder %v217, 0
      %vm318 = vcmp.ne.s32.totalorder %v224, 0
      %vm319 = vcmp.ne.s32.totalorder %v231, 0
      %vm320 = vcmp.ne.s32.totalorder %v238, 0
      %vm321 = vcmp.ne.s32.totalorder %v245, 0
      %vm322 = vcmp.ne.s32.totalorder %v252, 0
      %vm323 = vcmp.ne.s32.totalorder %v259, 0
      %vm324 = vcmp.ne.s32.totalorder %v266, 0
      %vm325 = vcmp.ne.s32.totalorder %v273, 0
      %vm326 = vcmp.ne.s32.totalorder %v280, 0
      %vm327 = vcmp.ne.s32.totalorder %v287, 0
      %vm328 = vcmp.ne.s32.totalorder %v294, 0
      %vm329 = vcmp.ne.s32.totalorder %v301, 0
      %vm330 = vcmp.ne.s32.totalorder %v308, 0
      %vm331 = vcmp.ne.s32.totalorder %v315, 0
      %vm332 = vcmp.lt.s32.totalorder %v210, 0
      %vm333 = vcmp.lt.s32.totalorder %v217, 0
      %vm334 = vcmp.lt.s32.totalorder %v224, 0
      %vm335 = vcmp.lt.s32.totalorder %v231, 0
      %vm336 = vcmp.lt.s32.totalorder %v238, 0
      %vm337 = vcmp.lt.s32.totalorder %v245, 0
      %vm338 = vcmp.lt.s32.totalorder %v252, 0
      %vm339 = vcmp.lt.s32.totalorder %v259, 0
      %vm340 = vcmp.lt.s32.totalorder %v266, 0
      %vm341 = vcmp.lt.s32.totalorder %v273, 0
      %vm342 = vcmp.lt.s32.totalorder %v280, 0
      %vm343 = vcmp.lt.s32.totalorder %v287, 0
      %vm344 = vcmp.lt.s32.totalorder %v294, 0
      %vm345 = vcmp.lt.s32.totalorder %v301, 0
      %vm346 = vcmp.lt.s32.totalorder %v308, 0
      %vm347 = vcmp.lt.s32.totalorder %v315, 0
      %vm348 = vmand %vm332, %vm316
      %vm349 = vmand %vm333, %vm317
      %vm350 = vmand %vm334, %vm318
      %vm351 = vmand %vm335, %vm319
      %vm352 = vmand %vm336, %vm320
      %vm353 = vmand %vm337, %vm321
      %vm354 = vmand %vm338, %vm322
      %vm355 = vmand %vm339, %vm323
      %vm356 = vmand %vm340, %vm324
      %vm357 = vmand %vm341, %vm325
      %vm358 = vmand %vm342, %vm326
      %vm359 = vmand %vm343, %vm327
      %vm360 = vmand %vm344, %vm328
      %vm361 = vmand %vm345, %vm329
      %vm362 = vmand %vm346, %vm330
      %vm363 = vmand %vm347, %vm331
      %v364 = vadd.s32 %v210, 16
      %v365 = vadd.s32 %v217, 16
      %v366 = vadd.s32 %v224, 16
      %v367 = vadd.s32 %v231, 16
      %v368 = vadd.s32 %v238, 16
      %v369 = vadd.s32 %v245, 16
      %v370 = vadd.s32 %v252, 16
      %v371 = vadd.s32 %v259, 16
      %v372 = vadd.s32 %v266, 16
      %v373 = vadd.s32 %v273, 16
      %v374 = vadd.s32 %v280, 16
      %v375 = vadd.s32 %v287, 16
      %v376 = vadd.s32 %v294, 16
      %v377 = vadd.s32 %v301, 16
      %v378 = vadd.s32 %v308, 16
      %v379 = vadd.s32 %v315, 16
      %v380 = vsel %vm348, %v364, %v210
      %v381 = vsel %vm349, %v365, %v217
      %v382 = vsel %vm350, %v366, %v224
      %v383 = vsel %vm351, %v367, %v231
      %v384 = vsel %vm352, %v368, %v238
      %v385 = vsel %vm353, %v369, %v245
      %v386 = vsel %vm354, %v370, %v252
      %v387 = vsel %vm355, %v371, %v259
      %v388 = vsel %vm356, %v372, %v266
      %v389 = vsel %vm357, %v373, %v273
      %v390 = vsel %vm358, %v374, %v280
      %v391 = vsel %vm359, %v375, %v287
      %v392 = vsel %vm360, %v376, %v294
      %v393 = vsel %vm361, %v377, %v301
      %v394 = vsel %vm362, %v378, %v308
      %v395 = vsel %vm363, %v379, %v315
      %vm396 = vcmp.ne.s32.totalorder %v380, 0
      %vm397 = vcmp.ne.s32.totalorder %v381, 0
      %vm398 = vcmp.ne.s32.totalorder %v382, 0
      %vm399 = vcmp.ne.s32.totalorder %v383, 0
      %vm400 = vcmp.ne.s32.totalorder %v384, 0
      %vm401 = vcmp.ne.s32.totalorder %v385, 0
      %vm402 = vcmp.ne.s32.totalorder %v386, 0
      %vm403 = vcmp.ne.s32.totalorder %v387, 0
      %vm404 = vcmp.ne.s32.totalorder %v388, 0
      %vm405 = vcmp.ne.s32.totalorder %v389, 0
      %vm406 = vcmp.ne.s32.totalorder %v390, 0
      %vm407 = vcmp.ne.s32.totalorder %v391, 0
      %vm408 = vcmp.ne.s32.totalorder %v392, 0
      %vm409 = vcmp.ne.s32.totalorder %v393, 0
      %vm410 = vcmp.ne.s32.totalorder %v394, 0
      %vm411 = vcmp.ne.s32.totalorder %v395, 0
      %vm412 = vcmp.ne.s32.totalorder %v380, 15
      %vm413 = vcmp.ne.s32.totalorder %v381, 15
      %vm414 = vcmp.ne.s32.totalorder %v382, 15
      %vm415 = vcmp.ne.s32.totalorder %v383, 15
      %vm416 = vcmp.ne.s32.totalorder %v384, 15
      %vm417 = vcmp.ne.s32.totalorder %v385, 15
      %vm418 = vcmp.ne.s32.totalorder %v386, 15
      %vm419 = vcmp.ne.s32.totalorder %v387, 15
      %vm420 = vcmp.ne.s32.totalorder %v388, 15
      %vm421 = vcmp.ne.s32.totalorder %v389, 15
      %vm422 = vcmp.ne.s32.totalorder %v390, 15
      %vm423 = vcmp.ne.s32.totalorder %v391, 15
      %vm424 = vcmp.ne.s32.totalorder %v392, 15
      %vm425 = vcmp.ne.s32.totalorder %v393, 15
      %vm426 = vcmp.ne.s32.totalorder %v394, 15
      %vm427 = vcmp.ne.s32.totalorder %v395, 15
      %v428 = vld [vmem:[%s173] sm:$0xff]
      %v429 = vld [vmem:[%s173 + $0x8] sm:$0xff]
      %v430 = vld [vmem:[%s173 + $0x10] sm:$0xff]
      %v431 = vld [vmem:[%s173 + $0x18] sm:$0xff]
      %v432 = vld [vmem:[%s173 + $0x20] sm:$0xff]
      %v433 = vld [vmem:[%s173 + $0x28] sm:$0xff]
      %v434 = vld [vmem:[%s173 + $0x30] sm:$0xff]
      %v435 = vld [vmem:[%s173 + $0x38] sm:$0xff]
      %v436 = vld [vmem:[%s173 + $0x40] sm:$0xff]
      %v437 = vld [vmem:[%s173 + $0x48] sm:$0xff]
      %v438 = vld [vmem:[%s173 + $0x50] sm:$0xff]
      %v439 = vld [vmem:[%s173 + $0x58] sm:$0xff]
      %v440 = vld [vmem:[%s173 + $0x60] sm:$0xff]
      %v441 = vld [vmem:[%s173 + $0x68] sm:$0xff]
      %v442 = vld [vmem:[%s173 + $0x70] sm:$0xff]
      %v443 = vld [vmem:[%s173 + $0x78] sm:$0xff]
      %v444 = vstv %s182
      %v445 = vadd.f32 %v428, %v444
      %v446 = vadd.f32 %v429, %v444
      %v447 = vadd.f32 %v430, %v444
      %v448 = vadd.f32 %v431, %v444
      %v449 = vadd.f32 %v432, %v444
      %v450 = vadd.f32 %v433, %v444
      %v451 = vadd.f32 %v434, %v444
      %v452 = vadd.f32 %v435, %v444
      %v453 = vadd.f32 %v436, %v444
      %v454 = vadd.f32 %v437, %v444
      %v455 = vadd.f32 %v438, %v444
      %v456 = vadd.f32 %v439, %v444
      %v457 = vadd.f32 %v440, %v444
      %v458 = vadd.f32 %v441, %v444
      %v459 = vadd.f32 %v442, %v444
      %v460 = vadd.f32 %v443, %v444
      %v461 = vrot.slane %v445, 7
      %v462 = vrot.slane %v446, 7
      %v463 = vrot.slane %v447, 7
      %v464 = vrot.slane %v448, 7
      %v465 = vrot.slane %v449, 7
      %v466 = vrot.slane %v450, 7
      %v467 = vrot.slane %v451, 7
      %v468 = vrot.slane %v452, 7
      %v469 = vrot.slane %v453, 7
      %v470 = vrot.slane %v454, 7
      %v471 = vrot.slane %v455, 7
      %v472 = vrot.slane %v456, 7
      %v473 = vrot.slane %v457, 7
      %v474 = vrot.slane %v458, 7
      %v475 = vrot.slane %v459, 7
      %v476 = vrot.slane %v460, 7
      %vm477 = vcmp.lt.s32.totalorder %v188, 1
      %v478 = vsel %vm477, %v475, %v476
      %v479 = vsel %vm477, %v474, %v475
      %v480 = vsel %vm477, %v473, %v474
      %v481 = vsel %vm477, %v472, %v473
      %v482 = vsel %vm477, %v471, %v472
      %v483 = vsel %vm477, %v470, %v471
      %v484 = vsel %vm477, %v469, %v470
      %v485 = vsel %vm477, %v468, %v469
      %v486 = vsel %vm477, %v467, %v468
      %v487 = vsel %vm477, %v466, %v467
      %v488 = vsel %vm477, %v465, %v466
      %v489 = vsel %vm477, %v464, %v465
      %v490 = vsel %vm477, %v463, %v464
      %v491 = vsel %vm477, %v462, %v463
      %v492 = vsel %vm477, %v461, %v462
      %v493 = vsel %vm477, %v476, %v461
      %v494 = vsel %vm396, %v493, 0.0
      %v495 = vsel %vm397, %v492, 0.0
      %v496 = vsel %vm398, %v491, 0.0
      %v497 = vsel %vm399, %v490, 0.0
      %v498 = vsel %vm400, %v489, 0.0
      %v499 = vsel %vm401, %v488, 0.0
      %v500 = vsel %vm402, %v487, 0.0
      %v501 = vsel %vm403, %v486, 0.0
      %v502 = vsel %vm404, %v485, 0.0
      %v503 = vsel %vm405, %v484, 0.0
      %v504 = vsel %vm406, %v483, 0.0
      %v505 = vsel %vm407, %v482, 0.0
      %v506 = vsel %vm408, %v481, 0.0
      %v507 = vsel %vm409, %v480, 0.0
      %v508 = vsel %vm410, %v479, 0.0
      %v509 = vsel %vm411, %v478, 0.0
      %v510 = vrot.slane %v445, 1
      %v511 = vrot.slane %v446, 1
      %v512 = vrot.slane %v447, 1
      %v513 = vrot.slane %v448, 1
      %v514 = vrot.slane %v449, 1
      %v515 = vrot.slane %v450, 1
      %v516 = vrot.slane %v451, 1
      %v517 = vrot.slane %v452, 1
      %v518 = vrot.slane %v453, 1
      %v519 = vrot.slane %v454, 1
      %v520 = vrot.slane %v455, 1
      %v521 = vrot.slane %v456, 1
      %v522 = vrot.slane %v457, 1
      %v523 = vrot.slane %v458, 1
      %v524 = vrot.slane %v459, 1
      %v525 = vrot.slane %v460, 1
      %vm526 = vcmp.lt.s32.totalorder %v188, 7
      %v527 = vsel %vm526, %v524, %v525
      %v528 = vsel %vm526, %v523, %v524
      %v529 = vsel %vm526, %v522, %v523
      %v530 = vsel %vm526, %v521, %v522
      %v531 = vsel %vm526, %v520, %v521
      %v532 = vsel %vm526, %v519, %v520
      %v533 = vsel %vm526, %v518, %v519
      %v534 = vsel %vm526, %v517, %v518
      %v535 = vsel %vm526, %v516, %v517
      %v536 = vsel %vm526, %v515, %v516
      %v537 = vsel %vm526, %v514, %v515
      %v538 = vsel %vm526, %v513, %v514
      %v539 = vsel %vm526, %v512, %v513
      %v540 = vsel %vm526, %v511, %v512
      %v541 = vsel %vm526, %v510, %v511
      %v542 = vsel %vm526, %v525, %v510
      %v543 = vsel %vm412, %v541, 0.0
      %v544 = vsel %vm413, %v540, 0.0
      %v545 = vsel %vm414, %v539, 0.0
      %v546 = vsel %vm415, %v538, 0.0
      %v547 = vsel %vm416, %v537, 0.0
      %v548 = vsel %vm417, %v536, 0.0
      %v549 = vsel %vm418, %v535, 0.0
      %v550 = vsel %vm419, %v534, 0.0
      %v551 = vsel %vm420, %v533, 0.0
      %v552 = vsel %vm421, %v532, 0.0
      %v553 = vsel %vm422, %v531, 0.0
      %v554 = vsel %vm423, %v530, 0.0
      %v555 = vsel %vm424, %v529, 0.0
      %v556 = vsel %vm425, %v528, 0.0
      %v557 = vsel %vm426, %v527, 0.0
      %v558 = vsel %vm427, %v542, 0.0
      %v559 = vpack.c.bf16 %v495, %v494
      %v560 = vpack.c.bf16 %v446, %v445
      %v561 = vpack.c.bf16 %v544, %v543
      %v562 = vpack.c.bf16 %v497, %v496
      %v563 = vpack.c.bf16 %v448, %v447
      %v564 = vpack.c.bf16 %v546, %v545
      %v565 = vpack.c.bf16 %v499, %v498
      %v566 = vpack.c.bf16 %v450, %v449
      %v567 = vpack.c.bf16 %v548, %v547
      %v568 = vpack.c.bf16 %v501, %v500
      %v569 = vpack.c.bf16 %v452, %v451
      %v570 = vpack.c.bf16 %v550, %v549
      %v571 = vpack.c.bf16 %v503, %v502
      %v572 = vpack.c.bf16 %v454, %v453
      %v573 = vpack.c.bf16 %v552, %v551
      %v574 = vpack.c.bf16 %v505, %v504
      %v575 = vpack.c.bf16 %v456, %v455
      %v576 = vpack.c.bf16 %v554, %v553
      %v577 = vpack.c.bf16 %v507, %v506
      %v578 = vpack.c.bf16 %v458, %v457
      %v579 = vpack.c.bf16 %v556, %v555
      %v580 = vpack.c.bf16 %v509, %v508
      %v581 = vpack.c.bf16 %v460, %v459
      %v582 = vpack.c.bf16 %v558, %v557
      %v583 = vld [vmem:[%s2] sm:$0xf]
      %v584 = vld [vmem:[%s2 + $0x4] sm:$0xf]
      %v585 = vld [vmem:[%s2 + $0x8] sm:$0xf]
      %v586 = vld [vmem:[%s2 + $0xc] sm:$0xf]
      %v587 = vld [vmem:[%s2 + $0x10] sm:$0xf]
      %v588 = vld [vmem:[%s2 + $0x14] sm:$0xf]
      %v589 = vld [vmem:[%s2 + $0x18] sm:$0xf]
      %v590 = vld [vmem:[%s2 + $0x1c] sm:$0xf]
      %v591 = vld [vmem:[%s2 + $0x20] sm:$0xf]
      %v592 = vld [vmem:[%s2 + $0x24] sm:$0xf]
      %v593 = vld [vmem:[%s2 + $0x28] sm:$0xf]
      %v594 = vld [vmem:[%s2 + $0x2c] sm:$0xf]
      %v595 = vld [vmem:[%s2 + $0x30] sm:$0xf]
      %v596 = vld [vmem:[%s2 + $0x34] sm:$0xf]
      %v597 = vld [vmem:[%s2 + $0x38] sm:$0xf]
      %v598 = vld [vmem:[%s2 + $0x3c] sm:$0xf]
      %v599 = vld [vmem:[%s2 + $0x40] sm:$0xf]
      %v600 = vld [vmem:[%s2 + $0x44] sm:$0xf]
      %v601 = vld [vmem:[%s2 + $0x48] sm:$0xf]
      %v602 = vld [vmem:[%s2 + $0x4c] sm:$0xf]
      %v603 = vld [vmem:[%s2 + $0x50] sm:$0xf]
      %v604 = vld [vmem:[%s2 + $0x54] sm:$0xf]
      %v605 = vld [vmem:[%s2 + $0x58] sm:$0xf]
      %v606 = vld [vmem:[%s2 + $0x5c] sm:$0xf]
      %v607 = vld [vmem:[%s2 + $0x60] sm:$0xf]
      %v608 = vld [vmem:[%s2 + $0x64] sm:$0xf]
      %v609 = vld [vmem:[%s2 + $0x68] sm:$0xf]
      %v610 = vld [vmem:[%s2 + $0x6c] sm:$0xf]
      %v611 = vld [vmem:[%s2 + $0x70] sm:$0xf]
      %v612 = vld [vmem:[%s2 + $0x74] sm:$0xf]
      %v613 = vld [vmem:[%s2 + $0x78] sm:$0xf]
      %v614 = vld [vmem:[%s2 + $0x7c] sm:$0xf]
      %v615 = vld [vmem:[%s2 + $0x80] sm:$0xf]
      %v616 = vld [vmem:[%s2 + $0x84] sm:$0xf]
      %v617 = vld [vmem:[%s2 + $0x88] sm:$0xf]
      %v618 = vld [vmem:[%s2 + $0x8c] sm:$0xf]
      %v619 = vld [vmem:[%s2 + $0x90] sm:$0xf]
      %v620 = vld [vmem:[%s2 + $0x94] sm:$0xf]
      %v621 = vld [vmem:[%s2 + $0x98] sm:$0xf]
      %v622 = vld [vmem:[%s2 + $0x9c] sm:$0xf]
      %v623 = vld [vmem:[%s2 + $0xa0] sm:$0xf]
      %v624 = vld [vmem:[%s2 + $0xa4] sm:$0xf]
      %v625 = vld [vmem:[%s2 + $0xa8] sm:$0xf]
      %v626 = vld [vmem:[%s2 + $0xac] sm:$0xf]
      %v627 = vld [vmem:[%s2 + $0xb0] sm:$0xf]
      %v628 = vld [vmem:[%s2 + $0xb4] sm:$0xf]
      %v629 = vld [vmem:[%s2 + $0xb8] sm:$0xf]
      %v630 = vld [vmem:[%s2 + $0xbc] sm:$0xf]
      %v631 = vstv %s183
      %v680 = vunpack.c.l.b16 %v583
      %v681 = vunpack.c.l.b16 %v584
      %v682 = vunpack.c.l.b16 %v585
      %v683 = vunpack.c.l.b16 %v586
      %v684 = vunpack.c.l.b16 %v587
      %v685 = vunpack.c.l.b16 %v588
      %v686 = vunpack.c.l.b16 %v589
      %v687 = vunpack.c.l.b16 %v590
      %v688 = vunpack.c.l.b16 %v591
      %v689 = vunpack.c.l.b16 %v592
      %v690 = vunpack.c.l.b16 %v593
      %v691 = vunpack.c.l.b16 %v594
      %v692 = vunpack.c.l.b16 %v595
      %v693 = vunpack.c.l.b16 %v596
      %v694 = vunpack.c.l.b16 %v597
      %v695 = vunpack.c.l.b16 %v598
      %v696 = vunpack.c.l.b16 %v599
      %v697 = vunpack.c.l.b16 %v600
      %v698 = vunpack.c.l.b16 %v601
      %v699 = vunpack.c.l.b16 %v602
      %v700 = vunpack.c.l.b16 %v603
      %v701 = vunpack.c.l.b16 %v604
      %v702 = vunpack.c.l.b16 %v605
      %v703 = vunpack.c.l.b16 %v606
      %v704 = vunpack.c.l.b16 %v607
      %v705 = vunpack.c.l.b16 %v608
      %v706 = vunpack.c.l.b16 %v609
      %v707 = vunpack.c.l.b16 %v610
      %v708 = vunpack.c.l.b16 %v611
      %v709 = vunpack.c.l.b16 %v612
      %v710 = vunpack.c.l.b16 %v613
      %v711 = vunpack.c.l.b16 %v614
      %v712 = vunpack.c.l.b16 %v615
      %v713 = vunpack.c.l.b16 %v616
      %v714 = vunpack.c.l.b16 %v617
      %v715 = vunpack.c.l.b16 %v618
      %v716 = vunpack.c.l.b16 %v619
      %v717 = vunpack.c.l.b16 %v620
      %v718 = vunpack.c.l.b16 %v621
      %v719 = vunpack.c.l.b16 %v622
      %v720 = vunpack.c.l.b16 %v623
      %v721 = vunpack.c.l.b16 %v624
      %v722 = vunpack.c.l.b16 %v625
      %v723 = vunpack.c.l.b16 %v626
      %v724 = vunpack.c.l.b16 %v627
      %v725 = vunpack.c.l.b16 %v628
      %v726 = vunpack.c.l.b16 %v629
      %v727 = vunpack.c.l.b16 %v630
      %v728 = vpack.c.b16 %v681, %v680
      %v729 = vpack.c.b16 %v683, %v682
      %v730 = vpack.c.b16 %v685, %v684
      %v731 = vpack.c.b16 %v687, %v686
      %v732 = vpack.c.b16 %v689, %v688
      %v733 = vpack.c.b16 %v691, %v690
      %v734 = vpack.c.b16 %v693, %v692
      %v735 = vpack.c.b16 %v695, %v694
      %v736 = vpack.c.b16 %v697, %v696
      %v737 = vpack.c.b16 %v699, %v698
      %v738 = vpack.c.b16 %v701, %v700
      %v739 = vpack.c.b16 %v703, %v702
      %v740 = vpack.c.b16 %v705, %v704
      %v741 = vpack.c.b16 %v707, %v706
      %v742 = vpack.c.b16 %v709, %v708
      %v743 = vpack.c.b16 %v711, %v710
      %v744 = vpack.c.b16 %v713, %v712
      %v745 = vpack.c.b16 %v715, %v714
      %v746 = vpack.c.b16 %v717, %v716
      %v747 = vpack.c.b16 %v719, %v718
      %v748 = vpack.c.b16 %v721, %v720
      %v749 = vpack.c.b16 %v723, %v722
      %v750 = vpack.c.b16 %v725, %v724
      %v751 = vpack.c.b16 %v727, %v726
      %776 = vmatprep.subr.bf16.mxu0 0
      %777 = vmatpush1.bf16.msra.mxu0 %v728
      %778 = vmatprep.subr.bf16.mxu0 0
      %779 = vmatpush1.bf16.msra.mxu0 %v729
      %780 = vmatprep.subr.bf16.mxu0 0
      %781 = vmatpush1.bf16.msra.mxu0 %v730
      %782 = vmatprep.subr.bf16.mxu0 0
      %783 = vmatpush1.bf16.msra.mxu0 %v731
      %784 = vmatprep.subr.bf16.mxu0 0
      %785 = vmatpush1.bf16.msra.mxu0 %v732
      %786 = vmatprep.subr.bf16.mxu0 0
      %787 = vmatpush1.bf16.msra.mxu0 %v733
      %788 = vmatprep.subr.bf16.mxu0 0
      %789 = vmatpush1.bf16.msra.mxu0 %v734
      %790 = vmatprep.subr.bf16.mxu0 0
      %791 = vmatpush1.bf16.msra.mxu0 %v735
      %792 = vmatprep.subr.bf16.mxu0 0
      %793 = vmatpush1.bf16.msra.mxu0 %v736
      %794 = vmatprep.subr.bf16.mxu0 0
      %795 = vmatpush1.bf16.msra.mxu0 %v737
      %796 = vmatprep.subr.bf16.mxu0 0
      %797 = vmatpush1.bf16.msra.mxu0 %v738
      %798 = vmatprep.subr.bf16.mxu0 0
      %799 = vmatpush1.bf16.msra.mxu0 %v739
      %800 = vmatprep.subr.bf16.mxu0 0
      %801 = vmatpush1.bf16.msra.mxu0 %v740
      %802 = vmatprep.subr.bf16.mxu0 0
      %803 = vmatpush1.bf16.msra.mxu0 %v741
      %804 = vmatprep.subr.bf16.mxu0 0
      %805 = vmatpush1.bf16.msra.mxu0 %v742
      %806 = vmatprep.subr.bf16.mxu0 0
      %807 = vmatpush1.bf16.msra.mxu0 %v743
      %808 = vmatprep.mubr.bf16.mxu0 %v560
      %809 = vmatmul.mubr.bf16.gmra.mrb[0].mxu0 %v559
      %v810 = vpop.f32.mrb[0].mxu0
      %v811 = vadd.f32 %v631, %v810
      %v812 = vpop.f32.mrb[0].mxu0
      %v813 = vpop.f32.mrb[0].mxu0
      %v814 = vadd.f32 %v631, %v813
      %v815 = vpop.f32.mrb[0].mxu0
      %816 = vmatprep.mubr.bf16.mxu0 %v563
      %817 = vmatmul.mubr.bf16.gmra.mrb[0].mxu0 %v562
      %v818 = vpop.f32.mrb[0].mxu0
      %v819 = vadd.f32 %v631, %v818
      %v820 = vpop.f32.mrb[0].mxu0
      %v821 = vpop.f32.mrb[0].mxu0
      %v822 = vadd.f32 %v631, %v821
      %v823 = vpop.f32.mrb[0].mxu0
      %824 = vmatprep.mubr.bf16.mxu0 %v566
      %825 = vmatmul.mubr.bf16.gmra.mrb[0].mxu0 %v565
      %v826 = vpop.f32.mrb[0].mxu0
      %v827 = vadd.f32 %v631, %v826
      %v828 = vpop.f32.mrb[0].mxu0
      %v829 = vpop.f32.mrb[0].mxu0
      %v830 = vadd.f32 %v631, %v829
      %v831 = vpop.f32.mrb[0].mxu0
      %832 = vmatprep.mubr.bf16.mxu0 %v569
      %833 = vmatmul.mubr.bf16.gmra.mrb[0].mxu0 %v568
      %v834 = vpop.f32.mrb[0].mxu0
      %v835 = vadd.f32 %v631, %v834
      %v836 = vpop.f32.mrb[0].mxu0
      %v837 = vpop.f32.mrb[0].mxu0
      %v838 = vadd.f32 %v631, %v837
      %v839 = vpop.f32.mrb[0].mxu0
      %840 = vmatprep.mubr.bf16.mxu0 %v572
      %841 = vmatmul.mubr.bf16.gmra.mrb[0].mxu0 %v571
      %v842 = vpop.f32.mrb[0].mxu0
      %v843 = vadd.f32 %v631, %v842
      %v844 = vpop.f32.mrb[0].mxu0
      %v845 = vpop.f32.mrb[0].mxu0
      %v846 = vadd.f32 %v631, %v845
      %v847 = vpop.f32.mrb[0].mxu0
      %848 = vmatprep.mubr.bf16.mxu0 %v575
      %849 = vmatmul.mubr.bf16.gmra.mrb[0].mxu0 %v574
      %v850 = vpop.f32.mrb[0].mxu0
      %v851 = vadd.f32 %v631, %v850
      %v852 = vpop.f32.mrb[0].mxu0
      %v853 = vpop.f32.mrb[0].mxu0
      %v854 = vadd.f32 %v631, %v853
      %v855 = vpop.f32.mrb[0].mxu0
      %856 = vmatprep.mubr.bf16.mxu0 %v578
      %857 = vmatmul.mubr.bf16.gmra.mrb[0].mxu0 %v577
      %v858 = vpop.f32.mrb[0].mxu0
      %v859 = vadd.f32 %v631, %v858
      %v860 = vpop.f32.mrb[0].mxu0
      %v861 = vpop.f32.mrb[0].mxu0
      %v862 = vadd.f32 %v631, %v861
      %v863 = vpop.f32.mrb[0].mxu0
      %864 = vmatprep.mubr.bf16.mxu0 %v581
      %865 = vmatmul.mubr.bf16.gmra.mrb[0].mxu0 %v580
      %v866 = vpop.f32.mrb[0].mxu0
      %v867 = vadd.f32 %v631, %v866
      %v868 = vpop.f32.mrb[0].mxu0
      %v869 = vpop.f32.mrb[0].mxu0
      %v870 = vadd.f32 %v631, %v869
      %v871 = vpop.f32.mrb[0].mxu0
      %872 = vdwg.mxu0
      %873 = vmatprep.subr.bf16.mxu0 0
      %874 = vmatpush1.bf16.msra.mxu0 %v744
      %875 = vmatprep.subr.bf16.mxu0 0
      %876 = vmatpush1.bf16.msra.mxu0 %v745
      %877 = vmatprep.subr.bf16.mxu0 0
      %878 = vmatpush1.bf16.msra.mxu0 %v746
      %879 = vmatprep.subr.bf16.mxu0 0
      %880 = vmatpush1.bf16.msra.mxu0 %v747
      %881 = vmatprep.subr.bf16.mxu0 0
      %882 = vmatpush1.bf16.msra.mxu0 %v748
      %883 = vmatprep.subr.bf16.mxu0 0
      %884 = vmatpush1.bf16.msra.mxu0 %v749
      %885 = vmatprep.subr.bf16.mxu0 0
      %886 = vmatpush1.bf16.msra.mxu0 %v750
      %887 = vmatprep.subr.bf16.mxu0 0
      %888 = vmatpush1.bf16.msra.mxu0 %v751
      %889 = vmatprep.subr.bf16.mxu0 0
      %890 = vmatpush1.bf16.msra.mxu0 0
      %891 = vmatprep.subr.bf16.mxu0 0
      %892 = vmatpush1.bf16.msra.mxu0 0
      %893 = vmatprep.subr.bf16.mxu0 0
      %894 = vmatpush1.bf16.msra.mxu0 0
      %895 = vmatprep.subr.bf16.mxu0 0
      %896 = vmatpush1.bf16.msra.mxu0 0
      %897 = vmatprep.subr.bf16.mxu0 0
      %898 = vmatpush1.bf16.msra.mxu0 0
      %899 = vmatprep.subr.bf16.mxu0 0
      %900 = vmatpush1.bf16.msra.mxu0 0
      %901 = vmatprep.subr.bf16.mxu0 0
      %902 = vmatpush1.bf16.msra.mxu0 0
      %903 = vmatprep.subr.bf16.mxu0 0
      %904 = vmatpush1.bf16.msra.mxu0 0
      %905 = vmatprep.mubr.bf16.mxu0 0
      %906 = vmatmul.mubr.bf16.gmra.mrb[0].mxu0 %v561
      %v907 = vpop.f32.mrb[0].mxu0
      %v908 = vadd.f32 %v811, %v907
      %v909 = vpop.f32.mrb[0].mxu0
      %v910 = vpop.f32.mrb[0].mxu0
      %v911 = vadd.f32 %v814, %v910
      %v912 = vpop.f32.mrb[0].mxu0
      %913 = vmatprep.mubr.bf16.mxu0 0
      %914 = vmatmul.mubr.bf16.gmra.mrb[0].mxu0 %v564
      %v915 = vpop.f32.mrb[0].mxu0
      %v916 = vadd.f32 %v819, %v915
      %v917 = vpop.f32.mrb[0].mxu0
      %v918 = vpop.f32.mrb[0].mxu0
      %v919 = vadd.f32 %v822, %v918
      %v920 = vpop.f32.mrb[0].mxu0
      %921 = vmatprep.mubr.bf16.mxu0 0
      %922 = vmatmul.mubr.bf16.gmra.mrb[0].mxu0 %v567
      %v923 = vpop.f32.mrb[0].mxu0
      %v924 = vadd.f32 %v827, %v923
      %v925 = vpop.f32.mrb[0].mxu0
      %v926 = vpop.f32.mrb[0].mxu0
      %v927 = vadd.f32 %v830, %v926
      %v928 = vpop.f32.mrb[0].mxu0
      %929 = vmatprep.mubr.bf16.mxu0 0
      %930 = vmatmul.mubr.bf16.gmra.mrb[0].mxu0 %v570
      %v931 = vpop.f32.mrb[0].mxu0
      %v932 = vadd.f32 %v835, %v931
      %v933 = vpop.f32.mrb[0].mxu0
      %v934 = vpop.f32.mrb[0].mxu0
      %v935 = vadd.f32 %v838, %v934
      %v936 = vpop.f32.mrb[0].mxu0
      %937 = vmatprep.mubr.bf16.mxu0 0
      %938 = vmatmul.mubr.bf16.gmra.mrb[0].mxu0 %v573
      %v939 = vpop.f32.mrb[0].mxu0
      %v940 = vadd.f32 %v843, %v939
      %v941 = vpop.f32.mrb[0].mxu0
      %v942 = vpop.f32.mrb[0].mxu0
      %v943 = vadd.f32 %v846, %v942
      %v944 = vpop.f32.mrb[0].mxu0
      %945 = vmatprep.mubr.bf16.mxu0 0
      %946 = vmatmul.mubr.bf16.gmra.mrb[0].mxu0 %v576
      %v947 = vpop.f32.mrb[0].mxu0
      %v948 = vadd.f32 %v851, %v947
      %v949 = vpop.f32.mrb[0].mxu0
      %v950 = vpop.f32.mrb[0].mxu0
      %v951 = vadd.f32 %v854, %v950
      %v952 = vpop.f32.mrb[0].mxu0
      %953 = vmatprep.mubr.bf16.mxu0 0
      %954 = vmatmul.mubr.bf16.gmra.mrb[0].mxu0 %v579
      %v955 = vpop.f32.mrb[0].mxu0
      %v956 = vadd.f32 %v859, %v955
      %v957 = vpop.f32.mrb[0].mxu0
      %v958 = vpop.f32.mrb[0].mxu0
      %v959 = vadd.f32 %v862, %v958
      %v960 = vpop.f32.mrb[0].mxu0
      %961 = vmatprep.mubr.bf16.mxu0 0
      %962 = vmatmul.mubr.bf16.gmra.mrb[0].mxu0 %v582
      %v963 = vpop.f32.mrb[0].mxu0
      %v964 = vadd.f32 %v867, %v963
      %v965 = vpop.f32.mrb[0].mxu0
      %v966 = vpop.f32.mrb[0].mxu0
      %v967 = vadd.f32 %v870, %v966
      %v968 = vpop.f32.mrb[0].mxu0
      %969 = vdwg.mxu0
      %vm970 = vcmp.ge.f32.partialorder %v908, 0.0
      %vm971 = vcmp.ge.f32.partialorder %v911, 0.0
      %vm972 = vcmp.ge.f32.partialorder %v916, 0.0
      %vm973 = vcmp.ge.f32.partialorder %v919, 0.0
      %vm974 = vcmp.ge.f32.partialorder %v924, 0.0
      %vm975 = vcmp.ge.f32.partialorder %v927, 0.0
      %vm976 = vcmp.ge.f32.partialorder %v932, 0.0
      %vm977 = vcmp.ge.f32.partialorder %v935, 0.0
      %vm978 = vcmp.ge.f32.partialorder %v940, 0.0
      %vm979 = vcmp.ge.f32.partialorder %v943, 0.0
      %vm980 = vcmp.ge.f32.partialorder %v948, 0.0
      %vm981 = vcmp.ge.f32.partialorder %v951, 0.0
      %vm982 = vcmp.ge.f32.partialorder %v956, 0.0
      %vm983 = vcmp.ge.f32.partialorder %v959, 0.0
      %vm984 = vcmp.ge.f32.partialorder %v964, 0.0
      %vm985 = vcmp.ge.f32.partialorder %v967, 0.0
      %v986 = vmul.f32 %v908, 0.01
      %v987 = vmul.f32 %v911, 0.01
      %v988 = vmul.f32 %v916, 0.01
      %v989 = vmul.f32 %v919, 0.01
      %v990 = vmul.f32 %v924, 0.01
      %v991 = vmul.f32 %v927, 0.01
      %v992 = vmul.f32 %v932, 0.01
      %v993 = vmul.f32 %v935, 0.01
      %v994 = vmul.f32 %v940, 0.01
      %v995 = vmul.f32 %v943, 0.01
      %v996 = vmul.f32 %v948, 0.01
      %v997 = vmul.f32 %v951, 0.01
      %v998 = vmul.f32 %v956, 0.01
      %v999 = vmul.f32 %v959, 0.01
      %v1000 = vmul.f32 %v964, 0.01
      %v1001 = vmul.f32 %v967, 0.01
      %v1002 = vsel %vm970, %v908, %v986
      %v1003 = vsel %vm971, %v911, %v987
      %v1004 = vsel %vm972, %v916, %v988
      %v1005 = vsel %vm973, %v919, %v989
      %v1006 = vsel %vm974, %v924, %v990
      %v1007 = vsel %vm975, %v927, %v991
      %v1008 = vsel %vm976, %v932, %v992
      %v1009 = vsel %vm977, %v935, %v993
      %v1010 = vsel %vm978, %v940, %v994
      %v1011 = vsel %vm979, %v943, %v995
      %v1012 = vsel %vm980, %v948, %v996
      %v1013 = vsel %vm981, %v951, %v997
      %v1014 = vsel %vm982, %v956, %v998
      %v1015 = vsel %vm983, %v959, %v999
      %v1016 = vsel %vm984, %v964, %v1000
      %v1017 = vsel %vm985, %v967, %v1001
      %v1018 = vstv %s184
      %v1019 = vadd.f32 %v1002, %v1018
      %v1020 = vadd.f32 %v1003, %v1018
      %v1021 = vadd.f32 %v1004, %v1018
      %v1022 = vadd.f32 %v1005, %v1018
      %v1023 = vadd.f32 %v1006, %v1018
      %v1024 = vadd.f32 %v1007, %v1018
      %v1025 = vadd.f32 %v1008, %v1018
      %v1026 = vadd.f32 %v1009, %v1018
      %v1027 = vadd.f32 %v1010, %v1018
      %v1028 = vadd.f32 %v1011, %v1018
      %v1029 = vadd.f32 %v1012, %v1018
      %v1030 = vadd.f32 %v1013, %v1018
      %v1031 = vadd.f32 %v1014, %v1018
      %v1032 = vadd.f32 %v1015, %v1018
      %v1033 = vadd.f32 %v1016, %v1018
      %v1034 = vadd.f32 %v1017, %v1018
      %v1035 = vrot.slane %v1019, 7
      %v1036 = vrot.slane %v1020, 7
      %v1037 = vrot.slane %v1021, 7
      %v1038 = vrot.slane %v1022, 7
      %v1039 = vrot.slane %v1023, 7
      %v1040 = vrot.slane %v1024, 7
      %v1041 = vrot.slane %v1025, 7
      %v1042 = vrot.slane %v1026, 7
      %v1043 = vrot.slane %v1027, 7
      %v1044 = vrot.slane %v1028, 7
      %v1045 = vrot.slane %v1029, 7
      %v1046 = vrot.slane %v1030, 7
      %v1047 = vrot.slane %v1031, 7
      %v1048 = vrot.slane %v1032, 7
      %v1049 = vrot.slane %v1033, 7
      %v1050 = vrot.slane %v1034, 7
      %v1051 = vsel %vm477, %v1049, %v1050
      %v1052 = vsel %vm477, %v1048, %v1049
      %v1053 = vsel %vm477, %v1047, %v1048
      %v1054 = vsel %vm477, %v1046, %v1047
      %v1055 = vsel %vm477, %v1045, %v1046
      %v1056 = vsel %vm477, %v1044, %v1045
      %v1057 = vsel %vm477, %v1043, %v1044
      %v1058 = vsel %vm477, %v1042, %v1043
      %v1059 = vsel %vm477, %v1041, %v1042
      %v1060 = vsel %vm477, %v1040, %v1041
      %v1061 = vsel %vm477, %v1039, %v1040
      %v1062 = vsel %vm477, %v1038, %v1039
      %v1063 = vsel %vm477, %v1037, %v1038
      %v1064 = vsel %vm477, %v1036, %v1037
      %v1065 = vsel %vm477, %v1035, %v1036
      %v1066 = vsel %vm477, %v1050, %v1035
      %v1067 = vsel %vm396, %v1066, 0.0
      %v1068 = vsel %vm397, %v1065, 0.0
      %v1069 = vsel %vm398, %v1064, 0.0
      %v1070 = vsel %vm399, %v1063, 0.0
      %v1071 = vsel %vm400, %v1062, 0.0
      %v1072 = vsel %vm401, %v1061, 0.0
      %v1073 = vsel %vm402, %v1060, 0.0
      %v1074 = vsel %vm403, %v1059, 0.0
      %v1075 = vsel %vm404, %v1058, 0.0
      %v1076 = vsel %vm405, %v1057, 0.0
      %v1077 = vsel %vm406, %v1056, 0.0
      %v1078 = vsel %vm407, %v1055, 0.0
      %v1079 = vsel %vm408, %v1054, 0.0
      %v1080 = vsel %vm409, %v1053, 0.0
      %v1081 = vsel %vm410, %v1052, 0.0
      %v1082 = vsel %vm411, %v1051, 0.0
      %v1083 = vrot.slane %v1019, 1
      %v1084 = vrot.slane %v1020, 1
      %v1085 = vrot.slane %v1021, 1
      %v1086 = vrot.slane %v1022, 1
      %v1087 = vrot.slane %v1023, 1
      %v1088 = vrot.slane %v1024, 1
      %v1089 = vrot.slane %v1025, 1
      %v1090 = vrot.slane %v1026, 1
      %v1091 = vrot.slane %v1027, 1
      %v1092 = vrot.slane %v1028, 1
      %v1093 = vrot.slane %v1029, 1
      %v1094 = vrot.slane %v1030, 1
      %v1095 = vrot.slane %v1031, 1
      %v1096 = vrot.slane %v1032, 1
      %v1097 = vrot.slane %v1033, 1
      %v1098 = vrot.slane %v1034, 1
      %v1099 = vsel %vm526, %v1097, %v1098
      %v1100 = vsel %vm526, %v1096, %v1097
      %v1101 = vsel %vm526, %v1095, %v1096
      %v1102 = vsel %vm526, %v1094, %v1095
      %v1103 = vsel %vm526, %v1093, %v1094
      %v1104 = vsel %vm526, %v1092, %v1093
      %v1105 = vsel %vm526, %v1091, %v1092
      %v1106 = vsel %vm526, %v1090, %v1091
      %v1107 = vsel %vm526, %v1089, %v1090
      %v1108 = vsel %vm526, %v1088, %v1089
      %v1109 = vsel %vm526, %v1087, %v1088
      %v1110 = vsel %vm526, %v1086, %v1087
      %v1111 = vsel %vm526, %v1085, %v1086
      %v1112 = vsel %vm526, %v1084, %v1085
      %v1113 = vsel %vm526, %v1083, %v1084
      %v1114 = vsel %vm526, %v1098, %v1083
      %v1115 = vsel %vm412, %v1113, 0.0
      %v1116 = vsel %vm413, %v1112, 0.0
      %v1117 = vsel %vm414, %v1111, 0.0
      %v1118 = vsel %vm415, %v1110, 0.0
      %v1119 = vsel %vm416, %v1109, 0.0
      %v1120 = vsel %vm417, %v1108, 0.0
      %v1121 = vsel %vm418, %v1107, 0.0
      %v1122 = vsel %vm419, %v1106, 0.0
      %v1123 = vsel %vm420, %v1105, 0.0
      %v1124 = vsel %vm421, %v1104, 0.0
      %v1125 = vsel %vm422, %v1103, 0.0
      %v1126 = vsel %vm423, %v1102, 0.0
      %v1127 = vsel %vm424, %v1101, 0.0
      %v1128 = vsel %vm425, %v1100, 0.0
      %v1129 = vsel %vm426, %v1099, 0.0
      %v1130 = vsel %vm427, %v1114, 0.0
      %v1131 = vpack.c.bf16 %v1068, %v1067
      %v1132 = vpack.c.bf16 %v1020, %v1019
      %v1133 = vpack.c.bf16 %v1116, %v1115
      %v1134 = vpack.c.bf16 %v1070, %v1069
      %v1135 = vpack.c.bf16 %v1022, %v1021
      %v1136 = vpack.c.bf16 %v1118, %v1117
      %v1137 = vpack.c.bf16 %v1072, %v1071
      %v1138 = vpack.c.bf16 %v1024, %v1023
      %v1139 = vpack.c.bf16 %v1120, %v1119
      %v1140 = vpack.c.bf16 %v1074, %v1073
      %v1141 = vpack.c.bf16 %v1026, %v1025
      %v1142 = vpack.c.bf16 %v1122, %v1121
      %v1143 = vpack.c.bf16 %v1076, %v1075
      %v1144 = vpack.c.bf16 %v1028, %v1027
      %v1145 = vpack.c.bf16 %v1124, %v1123
      %v1146 = vpack.c.bf16 %v1078, %v1077
      %v1147 = vpack.c.bf16 %v1030, %v1029
      %v1148 = vpack.c.bf16 %v1126, %v1125
      %v1149 = vpack.c.bf16 %v1080, %v1079
      %v1150 = vpack.c.bf16 %v1032, %v1031
      %v1151 = vpack.c.bf16 %v1128, %v1127
      %v1152 = vpack.c.bf16 %v1082, %v1081
      %v1153 = vpack.c.bf16 %v1034, %v1033
      %v1154 = vpack.c.bf16 %v1130, %v1129
      %v1155 = vld [vmem:[%s3] sm:$0xf]
      %v1156 = vld [vmem:[%s3 + $0x4] sm:$0xf]
      %v1157 = vld [vmem:[%s3 + $0x8] sm:$0xf]
      %v1158 = vld [vmem:[%s3 + $0xc] sm:$0xf]
      %v1159 = vld [vmem:[%s3 + $0x10] sm:$0xf]
      %v1160 = vld [vmem:[%s3 + $0x14] sm:$0xf]
      %v1161 = vld [vmem:[%s3 + $0x18] sm:$0xf]
      %v1162 = vld [vmem:[%s3 + $0x1c] sm:$0xf]
      %v1163 = vld [vmem:[%s3 + $0x20] sm:$0xf]
      %v1164 = vld [vmem:[%s3 + $0x24] sm:$0xf]
      %v1165 = vld [vmem:[%s3 + $0x28] sm:$0xf]
      %v1166 = vld [vmem:[%s3 + $0x2c] sm:$0xf]
      %v1167 = vld [vmem:[%s3 + $0x30] sm:$0xf]
      %v1168 = vld [vmem:[%s3 + $0x34] sm:$0xf]
      %v1169 = vld [vmem:[%s3 + $0x38] sm:$0xf]
      %v1170 = vld [vmem:[%s3 + $0x3c] sm:$0xf]
      %v1171 = vld [vmem:[%s3 + $0x40] sm:$0xf]
      %v1172 = vld [vmem:[%s3 + $0x44] sm:$0xf]
      %v1173 = vld [vmem:[%s3 + $0x48] sm:$0xf]
      %v1174 = vld [vmem:[%s3 + $0x4c] sm:$0xf]
      %v1175 = vld [vmem:[%s3 + $0x50] sm:$0xf]
      %v1176 = vld [vmem:[%s3 + $0x54] sm:$0xf]
      %v1177 = vld [vmem:[%s3 + $0x58] sm:$0xf]
      %v1178 = vld [vmem:[%s3 + $0x5c] sm:$0xf]
      %v1179 = vld [vmem:[%s3 + $0x60] sm:$0xf]
      %v1180 = vld [vmem:[%s3 + $0x64] sm:$0xf]
      %v1181 = vld [vmem:[%s3 + $0x68] sm:$0xf]
      %v1182 = vld [vmem:[%s3 + $0x6c] sm:$0xf]
      %v1183 = vld [vmem:[%s3 + $0x70] sm:$0xf]
      %v1184 = vld [vmem:[%s3 + $0x74] sm:$0xf]
      %v1185 = vld [vmem:[%s3 + $0x78] sm:$0xf]
      %v1186 = vld [vmem:[%s3 + $0x7c] sm:$0xf]
      %v1187 = vld [vmem:[%s3 + $0x80] sm:$0xf]
      %v1188 = vld [vmem:[%s3 + $0x84] sm:$0xf]
      %v1189 = vld [vmem:[%s3 + $0x88] sm:$0xf]
      %v1190 = vld [vmem:[%s3 + $0x8c] sm:$0xf]
      %v1191 = vld [vmem:[%s3 + $0x90] sm:$0xf]
      %v1192 = vld [vmem:[%s3 + $0x94] sm:$0xf]
      %v1193 = vld [vmem:[%s3 + $0x98] sm:$0xf]
      %v1194 = vld [vmem:[%s3 + $0x9c] sm:$0xf]
      %v1195 = vld [vmem:[%s3 + $0xa0] sm:$0xf]
      %v1196 = vld [vmem:[%s3 + $0xa4] sm:$0xf]
      %v1197 = vld [vmem:[%s3 + $0xa8] sm:$0xf]
      %v1198 = vld [vmem:[%s3 + $0xac] sm:$0xf]
      %v1199 = vld [vmem:[%s3 + $0xb0] sm:$0xf]
      %v1200 = vld [vmem:[%s3 + $0xb4] sm:$0xf]
      %v1201 = vld [vmem:[%s3 + $0xb8] sm:$0xf]
      %v1202 = vld [vmem:[%s3 + $0xbc] sm:$0xf]
      %v1251 = vunpack.c.l.b16 %v1155
      %v1252 = vunpack.c.l.b16 %v1156
      %v1253 = vunpack.c.l.b16 %v1157
      %v1254 = vunpack.c.l.b16 %v1158
      %v1255 = vunpack.c.l.b16 %v1159
      %v1256 = vunpack.c.l.b16 %v1160
      %v1257 = vunpack.c.l.b16 %v1161
      %v1258 = vunpack.c.l.b16 %v1162
      %v1259 = vunpack.c.l.b16 %v1163
      %v1260 = vunpack.c.l.b16 %v1164
      %v1261 = vunpack.c.l.b16 %v1165
      %v1262 = vunpack.c.l.b16 %v1166
      %v1263 = vunpack.c.l.b16 %v1167
      %v1264 = vunpack.c.l.b16 %v1168
      %v1265 = vunpack.c.l.b16 %v1169
      %v1266 = vunpack.c.l.b16 %v1170
      %v1267 = vunpack.c.l.b16 %v1171
      %v1268 = vunpack.c.l.b16 %v1172
      %v1269 = vunpack.c.l.b16 %v1173
      %v1270 = vunpack.c.l.b16 %v1174
      %v1271 = vunpack.c.l.b16 %v1175
      %v1272 = vunpack.c.l.b16 %v1176
      %v1273 = vunpack.c.l.b16 %v1177
      %v1274 = vunpack.c.l.b16 %v1178
      %v1275 = vunpack.c.l.b16 %v1179
      %v1276 = vunpack.c.l.b16 %v1180
      %v1277 = vunpack.c.l.b16 %v1181
      %v1278 = vunpack.c.l.b16 %v1182
      %v1279 = vunpack.c.l.b16 %v1183
      %v1280 = vunpack.c.l.b16 %v1184
      %v1281 = vunpack.c.l.b16 %v1185
      %v1282 = vunpack.c.l.b16 %v1186
      %v1283 = vunpack.c.l.b16 %v1187
      %v1284 = vunpack.c.l.b16 %v1188
      %v1285 = vunpack.c.l.b16 %v1189
      %v1286 = vunpack.c.l.b16 %v1190
      %v1287 = vunpack.c.l.b16 %v1191
      %v1288 = vunpack.c.l.b16 %v1192
      %v1289 = vunpack.c.l.b16 %v1193
      %v1290 = vunpack.c.l.b16 %v1194
      %v1291 = vunpack.c.l.b16 %v1195
      %v1292 = vunpack.c.l.b16 %v1196
      %v1293 = vunpack.c.l.b16 %v1197
      %v1294 = vunpack.c.l.b16 %v1198
      %v1295 = vunpack.c.l.b16 %v1199
      %v1296 = vunpack.c.l.b16 %v1200
      %v1297 = vunpack.c.l.b16 %v1201
      %v1298 = vunpack.c.l.b16 %v1202
      %v1299 = vpack.c.b16 %v1252, %v1251
      %v1300 = vpack.c.b16 %v1254, %v1253
      %v1301 = vpack.c.b16 %v1256, %v1255
      %v1302 = vpack.c.b16 %v1258, %v1257
      %v1303 = vpack.c.b16 %v1260, %v1259
      %v1304 = vpack.c.b16 %v1262, %v1261
      %v1305 = vpack.c.b16 %v1264, %v1263
      %v1306 = vpack.c.b16 %v1266, %v1265
      %v1307 = vpack.c.b16 %v1268, %v1267
      %v1308 = vpack.c.b16 %v1270, %v1269
      %v1309 = vpack.c.b16 %v1272, %v1271
      %v1310 = vpack.c.b16 %v1274, %v1273
      %v1311 = vpack.c.b16 %v1276, %v1275
      %v1312 = vpack.c.b16 %v1278, %v1277
      %v1313 = vpack.c.b16 %v1280, %v1279
      %v1314 = vpack.c.b16 %v1282, %v1281
      %v1315 = vpack.c.b16 %v1284, %v1283
      %v1316 = vpack.c.b16 %v1286, %v1285
      %v1317 = vpack.c.b16 %v1288, %v1287
      %v1318 = vpack.c.b16 %v1290, %v1289
      %v1319 = vpack.c.b16 %v1292, %v1291
      %v1320 = vpack.c.b16 %v1294, %v1293
      %v1321 = vpack.c.b16 %v1296, %v1295
      %v1322 = vpack.c.b16 %v1298, %v1297
      %1347 = vmatprep.subr.bf16.mxu0 0
      %1348 = vmatpush1.bf16.msra.mxu0 %v1299
      %1349 = vmatprep.subr.bf16.mxu0 0
      %1350 = vmatpush1.bf16.msra.mxu0 %v1300
      %1351 = vmatprep.subr.bf16.mxu0 0
      %1352 = vmatpush1.bf16.msra.mxu0 %v1301
      %1353 = vmatprep.subr.bf16.mxu0 0
      %1354 = vmatpush1.bf16.msra.mxu0 %v1302
      %1355 = vmatprep.subr.bf16.mxu0 0
      %1356 = vmatpush1.bf16.msra.mxu0 %v1303
      %1357 = vmatprep.subr.bf16.mxu0 0
      %1358 = vmatpush1.bf16.msra.mxu0 %v1304
      %1359 = vmatprep.subr.bf16.mxu0 0
      %1360 = vmatpush1.bf16.msra.mxu0 %v1305
      %1361 = vmatprep.subr.bf16.mxu0 0
      %1362 = vmatpush1.bf16.msra.mxu0 %v1306
      %1363 = vmatprep.subr.bf16.mxu0 0
      %1364 = vmatpush1.bf16.msra.mxu0 %v1307
      %1365 = vmatprep.subr.bf16.mxu0 0
      %1366 = vmatpush1.bf16.msra.mxu0 %v1308
      %1367 = vmatprep.subr.bf16.mxu0 0
      %1368 = vmatpush1.bf16.msra.mxu0 %v1309
      %1369 = vmatprep.subr.bf16.mxu0 0
      %1370 = vmatpush1.bf16.msra.mxu0 %v1310
      %1371 = vmatprep.subr.bf16.mxu0 0
      %1372 = vmatpush1.bf16.msra.mxu0 %v1311
      %1373 = vmatprep.subr.bf16.mxu0 0
      %1374 = vmatpush1.bf16.msra.mxu0 %v1312
      %1375 = vmatprep.subr.bf16.mxu0 0
      %1376 = vmatpush1.bf16.msra.mxu0 %v1313
      %1377 = vmatprep.subr.bf16.mxu0 0
      %1378 = vmatpush1.bf16.msra.mxu0 %v1314
      %1379 = vmatprep.mubr.bf16.mxu0 %v1132
      %1380 = vmatmul.mubr.bf16.gmra.mrb[0].mxu0 %v1131
      %v1381 = vpop.f32.mrb[0].mxu0
      %v1382 = vadd.f32 0.0, %v1381
      %v1383 = vpop.f32.mrb[0].mxu0
      %v1384 = vpop.f32.mrb[0].mxu0
      %v1385 = vadd.f32 0.0, %v1384
      %v1386 = vpop.f32.mrb[0].mxu0
      %1387 = vmatprep.mubr.bf16.mxu0 %v1135
      %1388 = vmatmul.mubr.bf16.gmra.mrb[0].mxu0 %v1134
      %v1389 = vpop.f32.mrb[0].mxu0
      %v1390 = vadd.f32 0.0, %v1389
      %v1391 = vpop.f32.mrb[0].mxu0
      %v1392 = vpop.f32.mrb[0].mxu0
      %v1393 = vadd.f32 0.0, %v1392
      %v1394 = vpop.f32.mrb[0].mxu0
      %1395 = vmatprep.mubr.bf16.mxu0 %v1138
      %1396 = vmatmul.mubr.bf16.gmra.mrb[0].mxu0 %v1137
      %v1397 = vpop.f32.mrb[0].mxu0
      %v1398 = vadd.f32 0.0, %v1397
      %v1399 = vpop.f32.mrb[0].mxu0
      %v1400 = vpop.f32.mrb[0].mxu0
      %v1401 = vadd.f32 0.0, %v1400
      %v1402 = vpop.f32.mrb[0].mxu0
      %1403 = vmatprep.mubr.bf16.mxu0 %v1141
      %1404 = vmatmul.mubr.bf16.gmra.mrb[0].mxu0 %v1140
      %v1405 = vpop.f32.mrb[0].mxu0
      %v1406 = vadd.f32 0.0, %v1405
      %v1407 = vpop.f32.mrb[0].mxu0
      %v1408 = vpop.f32.mrb[0].mxu0
      %v1409 = vadd.f32 0.0, %v1408
      %v1410 = vpop.f32.mrb[0].mxu0
      %1411 = vmatprep.mubr.bf16.mxu0 %v1144
      %1412 = vmatmul.mubr.bf16.gmra.mrb[0].mxu0 %v1143
      %v1413 = vpop.f32.mrb[0].mxu0
      %v1414 = vadd.f32 0.0, %v1413
      %v1415 = vpop.f32.mrb[0].mxu0
      %v1416 = vpop.f32.mrb[0].mxu0
      %v1417 = vadd.f32 0.0, %v1416
      %v1418 = vpop.f32.mrb[0].mxu0
      %1419 = vmatprep.mubr.bf16.mxu0 %v1147
      %1420 = vmatmul.mubr.bf16.gmra.mrb[0].mxu0 %v1146
      %v1421 = vpop.f32.mrb[0].mxu0
      %v1422 = vadd.f32 0.0, %v1421
      %v1423 = vpop.f32.mrb[0].mxu0
      %v1424 = vpop.f32.mrb[0].mxu0
      %v1425 = vadd.f32 0.0, %v1424
      %v1426 = vpop.f32.mrb[0].mxu0
      %1427 = vmatprep.mubr.bf16.mxu0 %v1150
      %1428 = vmatmul.mubr.bf16.gmra.mrb[0].mxu0 %v1149
      %v1429 = vpop.f32.mrb[0].mxu0
      %v1430 = vadd.f32 0.0, %v1429
      %v1431 = vpop.f32.mrb[0].mxu0
      %v1432 = vpop.f32.mrb[0].mxu0
      %v1433 = vadd.f32 0.0, %v1432
      %v1434 = vpop.f32.mrb[0].mxu0
      %1435 = vmatprep.mubr.bf16.mxu0 %v1153
      %1436 = vmatmul.mubr.bf16.gmra.mrb[0].mxu0 %v1152
      %v1437 = vpop.f32.mrb[0].mxu0
      %v1438 = vadd.f32 0.0, %v1437
      %v1439 = vpop.f32.mrb[0].mxu0
      %v1440 = vpop.f32.mrb[0].mxu0
      %v1441 = vadd.f32 0.0, %v1440
      %v1442 = vpop.f32.mrb[0].mxu0
      %1443 = vdwg.mxu0
      %1444 = vmatprep.subr.bf16.mxu0 0
      %1445 = vmatpush1.bf16.msra.mxu0 %v1315
      %1446 = vmatprep.subr.bf16.mxu0 0
      %1447 = vmatpush1.bf16.msra.mxu0 %v1316
      %1448 = vmatprep.subr.bf16.mxu0 0
      %1449 = vmatpush1.bf16.msra.mxu0 %v1317
      %1450 = vmatprep.subr.bf16.mxu0 0
      %1451 = vmatpush1.bf16.msra.mxu0 %v1318
      %1452 = vmatprep.subr.bf16.mxu0 0
      %1453 = vmatpush1.bf16.msra.mxu0 %v1319
      %1454 = vmatprep.subr.bf16.mxu0 0
      %1455 = vmatpush1.bf16.msra.mxu0 %v1320
      %1456 = vmatprep.subr.bf16.mxu0 0
      %1457 = vmatpush1.bf16.msra.mxu0 %v1321
      %1458 = vmatprep.subr.bf16.mxu0 0
      %1459 = vmatpush1.bf16.msra.mxu0 %v1322
      %1460 = vmatprep.subr.bf16.mxu0 0
      %1461 = vmatpush1.bf16.msra.mxu0 0
      %1462 = vmatprep.subr.bf16.mxu0 0
      %1463 = vmatpush1.bf16.msra.mxu0 0
      %1464 = vmatprep.subr.bf16.mxu0 0
      %1465 = vmatpush1.bf16.msra.mxu0 0
      %1466 = vmatprep.subr.bf16.mxu0 0
      %1467 = vmatpush1.bf16.msra.mxu0 0
      %1468 = vmatprep.subr.bf16.mxu0 0
      %1469 = vmatpush1.bf16.msra.mxu0 0
      %1470 = vmatprep.subr.bf16.mxu0 0
      %1471 = vmatpush1.bf16.msra.mxu0 0
      %1472 = vmatprep.subr.bf16.mxu0 0
      %1473 = vmatpush1.bf16.msra.mxu0 0
      %1474 = vmatprep.subr.bf16.mxu0 0
      %1475 = vmatpush1.bf16.msra.mxu0 0
      %1476 = vmatprep.mubr.bf16.mxu0 0
      %1477 = vmatmul.mubr.bf16.gmra.mrb[0].mxu0 %v1133
      %v1478 = vpop.f32.mrb[0].mxu0
      %v1479 = vadd.f32 %v1382, %v1478
      %v1480 = vpop.f32.mrb[0].mxu0
      %v1481 = vpop.f32.mrb[0].mxu0
      %v1482 = vadd.f32 %v1385, %v1481
      %v1483 = vpop.f32.mrb[0].mxu0
      %1484 = vmatprep.mubr.bf16.mxu0 0
      %1485 = vmatmul.mubr.bf16.gmra.mrb[0].mxu0 %v1136
      %v1486 = vpop.f32.mrb[0].mxu0
      %v1487 = vadd.f32 %v1390, %v1486
      %v1488 = vpop.f32.mrb[0].mxu0
      %v1489 = vpop.f32.mrb[0].mxu0
      %v1490 = vadd.f32 %v1393, %v1489
      %v1491 = vpop.f32.mrb[0].mxu0
      %1492 = vmatprep.mubr.bf16.mxu0 0
      %1493 = vmatmul.mubr.bf16.gmra.mrb[0].mxu0 %v1139
      %v1494 = vpop.f32.mrb[0].mxu0
      %v1495 = vadd.f32 %v1398, %v1494
      %v1496 = vpop.f32.mrb[0].mxu0
      %v1497 = vpop.f32.mrb[0].mxu0
      %v1498 = vadd.f32 %v1401, %v1497
      %v1499 = vpop.f32.mrb[0].mxu0
      %1500 = vmatprep.mubr.bf16.mxu0 0
      %1501 = vmatmul.mubr.bf16.gmra.mrb[0].mxu0 %v1142
      %v1502 = vpop.f32.mrb[0].mxu0
      %v1503 = vadd.f32 %v1406, %v1502
      %v1504 = vpop.f32.mrb[0].mxu0
      %v1505 = vpop.f32.mrb[0].mxu0
      %v1506 = vadd.f32 %v1409, %v1505
      %v1507 = vpop.f32.mrb[0].mxu0
      %1508 = vmatprep.mubr.bf16.mxu0 0
      %1509 = vmatmul.mubr.bf16.gmra.mrb[0].mxu0 %v1145
      %v1510 = vpop.f32.mrb[0].mxu0
      %v1511 = vadd.f32 %v1414, %v1510
      %v1512 = vpop.f32.mrb[0].mxu0
      %v1513 = vpop.f32.mrb[0].mxu0
      %v1514 = vadd.f32 %v1417, %v1513
      %v1515 = vpop.f32.mrb[0].mxu0
      %1516 = vmatprep.mubr.bf16.mxu0 0
      %1517 = vmatmul.mubr.bf16.gmra.mrb[0].mxu0 %v1148
      %v1518 = vpop.f32.mrb[0].mxu0
      %v1519 = vadd.f32 %v1422, %v1518
      %v1520 = vpop.f32.mrb[0].mxu0
      %v1521 = vpop.f32.mrb[0].mxu0
      %v1522 = vadd.f32 %v1425, %v1521
      %v1523 = vpop.f32.mrb[0].mxu0
      %1524 = vmatprep.mubr.bf16.mxu0 0
      %1525 = vmatmul.mubr.bf16.gmra.mrb[0].mxu0 %v1151
      %v1526 = vpop.f32.mrb[0].mxu0
      %v1527 = vadd.f32 %v1430, %v1526
      %v1528 = vpop.f32.mrb[0].mxu0
      %v1529 = vpop.f32.mrb[0].mxu0
      %v1530 = vadd.f32 %v1433, %v1529
      %v1531 = vpop.f32.mrb[0].mxu0
      %1532 = vmatprep.mubr.bf16.mxu0 0
      %1533 = vmatmul.mubr.bf16.gmra.mrb[0].mxu0 %v1154
      %v1534 = vpop.f32.mrb[0].mxu0
      %v1535 = vadd.f32 %v1438, %v1534
      %v1536 = vpop.f32.mrb[0].mxu0
      %v1537 = vpop.f32.mrb[0].mxu0
      %v1538 = vadd.f32 %v1441, %v1537
      %v1539 = vpop.f32.mrb[0].mxu0
      %1540 = vdwg.mxu0
      %v1541 = vstv %s185
      %v1542 = vmul.f32 %v1479, %v1541
      %v1543 = vmul.f32 %v1482, %v1541
      %v1544 = vmul.f32 %v1487, %v1541
      %v1545 = vmul.f32 %v1490, %v1541
      %v1546 = vmul.f32 %v1495, %v1541
      %v1547 = vmul.f32 %v1498, %v1541
      %v1548 = vmul.f32 %v1503, %v1541
      %v1549 = vmul.f32 %v1506, %v1541
      %v1550 = vmul.f32 %v1511, %v1541
      %v1551 = vmul.f32 %v1514, %v1541
      %v1552 = vmul.f32 %v1519, %v1541
      %v1553 = vmul.f32 %v1522, %v1541
      %v1554 = vmul.f32 %v1527, %v1541
      %v1555 = vmul.f32 %v1530, %v1541
      %v1556 = vmul.f32 %v1535, %v1541
      %v1557 = vmul.f32 %v1538, %v1541
      %v1558 = vstv %s186
      %v1559 = vadd.f32 %v1542, %v1558
      %v1560 = vadd.f32 %v1543, %v1558
      %v1561 = vadd.f32 %v1544, %v1558
      %v1562 = vadd.f32 %v1545, %v1558
      %v1563 = vadd.f32 %v1546, %v1558
      %v1564 = vadd.f32 %v1547, %v1558
      %v1565 = vadd.f32 %v1548, %v1558
      %v1566 = vadd.f32 %v1549, %v1558
      %v1567 = vadd.f32 %v1550, %v1558
      %v1568 = vadd.f32 %v1551, %v1558
      %v1569 = vadd.f32 %v1552, %v1558
      %v1570 = vadd.f32 %v1553, %v1558
      %v1571 = vadd.f32 %v1554, %v1558
      %v1572 = vadd.f32 %v1555, %v1558
      %v1573 = vadd.f32 %v1556, %v1558
      %v1574 = vadd.f32 %v1557, %v1558
      %v1575 = vadd.f32 %v1559, %v428
      %v1576 = vadd.f32 %v1560, %v429
      %v1577 = vadd.f32 %v1561, %v430
      %v1578 = vadd.f32 %v1562, %v431
      %v1579 = vadd.f32 %v1563, %v432
      %v1580 = vadd.f32 %v1564, %v433
      %v1581 = vadd.f32 %v1565, %v434
      %v1582 = vadd.f32 %v1566, %v435
      %v1583 = vadd.f32 %v1567, %v436
      %v1584 = vadd.f32 %v1568, %v437
      %v1585 = vadd.f32 %v1569, %v438
      %v1586 = vadd.f32 %v1570, %v439
      %v1587 = vadd.f32 %v1571, %v440
      %v1588 = vadd.f32 %v1572, %v441
      %v1589 = vadd.f32 %v1573, %v442
      %v1590 = vadd.f32 %v1574, %v443
      %vm1591 = vcmp.ge.f32.partialorder %v1575, 0.0
      %vm1592 = vcmp.ge.f32.partialorder %v1576, 0.0
      %vm1593 = vcmp.ge.f32.partialorder %v1577, 0.0
      %vm1594 = vcmp.ge.f32.partialorder %v1578, 0.0
      %vm1595 = vcmp.ge.f32.partialorder %v1579, 0.0
      %vm1596 = vcmp.ge.f32.partialorder %v1580, 0.0
      %vm1597 = vcmp.ge.f32.partialorder %v1581, 0.0
      %vm1598 = vcmp.ge.f32.partialorder %v1582, 0.0
      %vm1599 = vcmp.ge.f32.partialorder %v1583, 0.0
      %vm1600 = vcmp.ge.f32.partialorder %v1584, 0.0
      %vm1601 = vcmp.ge.f32.partialorder %v1585, 0.0
      %vm1602 = vcmp.ge.f32.partialorder %v1586, 0.0
      %vm1603 = vcmp.ge.f32.partialorder %v1587, 0.0
      %vm1604 = vcmp.ge.f32.partialorder %v1588, 0.0
      %vm1605 = vcmp.ge.f32.partialorder %v1589, 0.0
      %vm1606 = vcmp.ge.f32.partialorder %v1590, 0.0
      %v1607 = vmul.f32 %v1575, 0.01
      %v1608 = vmul.f32 %v1576, 0.01
      %v1609 = vmul.f32 %v1577, 0.01
      %v1610 = vmul.f32 %v1578, 0.01
      %v1611 = vmul.f32 %v1579, 0.01
      %v1612 = vmul.f32 %v1580, 0.01
      %v1613 = vmul.f32 %v1581, 0.01
      %v1614 = vmul.f32 %v1582, 0.01
      %v1615 = vmul.f32 %v1583, 0.01
      %v1616 = vmul.f32 %v1584, 0.01
      %v1617 = vmul.f32 %v1585, 0.01
      %v1618 = vmul.f32 %v1586, 0.01
      %v1619 = vmul.f32 %v1587, 0.01
      %v1620 = vmul.f32 %v1588, 0.01
      %v1621 = vmul.f32 %v1589, 0.01
      %v1622 = vmul.f32 %v1590, 0.01
      %v1623 = vsel %vm1591, %v1575, %v1607
      %v1624 = vsel %vm1592, %v1576, %v1608
      %v1625 = vsel %vm1593, %v1577, %v1609
      %v1626 = vsel %vm1594, %v1578, %v1610
      %v1627 = vsel %vm1595, %v1579, %v1611
      %v1628 = vsel %vm1596, %v1580, %v1612
      %v1629 = vsel %vm1597, %v1581, %v1613
      %v1630 = vsel %vm1598, %v1582, %v1614
      %v1631 = vsel %vm1599, %v1583, %v1615
      %v1632 = vsel %vm1600, %v1584, %v1616
      %v1633 = vsel %vm1601, %v1585, %v1617
      %v1634 = vsel %vm1602, %v1586, %v1618
      %v1635 = vsel %vm1603, %v1587, %v1619
      %v1636 = vsel %vm1604, %v1588, %v1620
      %v1637 = vsel %vm1605, %v1589, %v1621
      %v1638 = vsel %vm1606, %v1590, %v1622
      %1639 = vst [vmem:[%s179] sm:$0xff] %v1623
      %1640 = vst [vmem:[%s179 + $0x8] sm:$0xff] %v1624
      %1641 = vst [vmem:[%s179 + $0x10] sm:$0xff] %v1625
      %1642 = vst [vmem:[%s179 + $0x18] sm:$0xff] %v1626
      %1643 = vst [vmem:[%s179 + $0x20] sm:$0xff] %v1627
      %1644 = vst [vmem:[%s179 + $0x28] sm:$0xff] %v1628
      %1645 = vst [vmem:[%s179 + $0x30] sm:$0xff] %v1629
      %1646 = vst [vmem:[%s179 + $0x38] sm:$0xff] %v1630
      %1647 = vst [vmem:[%s179 + $0x40] sm:$0xff] %v1631
      %1648 = vst [vmem:[%s179 + $0x48] sm:$0xff] %v1632
      %1649 = vst [vmem:[%s179 + $0x50] sm:$0xff] %v1633
      %1650 = vst [vmem:[%s179 + $0x58] sm:$0xff] %v1634
      %1651 = vst [vmem:[%s179 + $0x60] sm:$0xff] %v1635
      %1652 = vst [vmem:[%s179 + $0x68] sm:$0xff] %v1636
      %1653 = vst [vmem:[%s179 + $0x70] sm:$0xff] %v1637
      %1654 = vst [vmem:[%s179 + $0x78] sm:$0xff] %v1638
      %s1655 = smul.u32 16, %s21
      %p1656 = scmp.lt.s32.totalorder %s1655, 31
      %s1657 = scalar_select %p1656, %s1655, 31
      %s1658 = smul.addr %s1657, 8
      %s1659 = scalar_lea.vmem %s4, %s1658
      // Predicated region
      $region33: #{fixup_basic_block.1} parent=31 // pred_check
        %p1660 = pneg %p107
      $region34: #{fixup_basic_block.1} parent=31 // pred_check_branch
        %1662 = sbr.rel (%p1660) target = $region36
      $region35: #{fixup_basic_block.1} parent=31 // pred_region
        %s1663 = smul.u32 16, %s21
      $region36: #{fixup_basic_block.1} parent=31 // pred_fallthru
        _
    $region32: #{fixup_basic_block.1} parent=5 // pred_fallthru
      _
    %p1664 = scmp.le.s32.totalorder 2, %s16
    // Predicated region
    $region37: #{fixup_basic_block.1} parent=5 // pred_check
      %p1665 = pneg %p1664
    $region38: #{fixup_basic_block.1} parent=5 // pred_check_branch
      %1667 = sbr.rel (%p1665) target = $region40
    $region39: #{fixup_basic_block.1} parent=5 // pred_region
      %s1668 = ssub.s32 %s16, 2
      // Predicated region
      $region41: #{fixup_basic_block.1} parent=39 // pred_check
        %p1669 = pneg %p113
      $region42: #{fixup_basic_block.1} parent=39 // pred_check_branch
        %1671 = sbr.rel (%p1669) target = $region44
      $region43: #{fixup_basic_block.1} parent=39 // pred_region
        %s1672 = smul.u32 16, %s22
        %p1673 = scmp.lt.s32.totalorder %s1672, 31
        %s1674 = scalar_select %p1673, %s1672, 31
        %s1675 = smul.addr %s1674, 8
        %s1676 = scalar_lea.vmem %s4, %s1675
      $region44: #{fixup_basic_block.1} parent=39 // pred_fallthru
        _
    $region40: #{fixup_basic_block.1} parent=5 // pred_fallthru
      _
  $region6: #{fixup_basic_block.1} parent=0 // loop_footer
    %s20 = sadd.s32 1, %s16
  $region7: #{fixup_basic_block.1} parent=0 // loop_footer_branch
    %15 = sbr.rel target = $region3
  $region8: #{fixup_basic_block.1} parent=0 // loop_exit
    _

</llo_original>
